<compile_context>
chip_gen: v7x
topology: tpu7x:2x2x1
jax: 0.10.0
libtpu: 0.0.40
codegen_flags: <defaults>
</compile_context>

<pallas_src>
import functools

import numpy as np

import jax
import jax.numpy as jnp
from jax import lax
from jax.experimental import pallas as pl
from jax.experimental.pallas import tpu as pltpu


# ----------------------------------------------------------------------------
# Fused kernel: conv1+relu -> conv_ext+relu -> flatten -> fc1+relu
#               -> fc_ext+relu -> out
# One grid step == Bt images packed along the lane axis. All operands are
# whole-array VMEM blocks; intermediates never touch HBM.
# ----------------------------------------------------------------------------
def _fused_kernel(x_ref, mask_ref, w1_ref, b1_ref, w2_ref, b2_ref,
                  wf1_ref, bf1_ref, wf2_ref, bf2_ref, wo_ref, bo_ref,
                  o_ref, tap_ref, flat_ref, *, H, W, Bt):
    HW = H * W
    L = Bt * HW
    f32 = jnp.float32

    def conv3x3_relu(a, w_ref, b_ref):
        """a: (Cin, L); w_ref: (Cout, 9*Cin); b_ref: (Cout, 1) -> (Cout, L).

        3x3 / stride 1 / zero-pad 1 conv as ONE MXU dot: each tap (dy, dx) is a
        lane-roll of the activation, zeroed where the tap falls outside its own
        image (per-tap mask, which also kills cross-image wrap from the roll),
        stacked along the sublane / contraction axis into the tap scratch slab.
        """
        cin = a.shape[0]
        for dy in (-1, 0, 1):
            for dx in (-1, 0, 1):
                t = (dy + 1) * 3 + (dx + 1)          # tap index == weight col block
                delta = dy * W + dx                  # flat-lane offset of the tap
                if delta == 0:
                    tap = a                          # center tap: mask is all-ones
                else:
                    # want tap[:, j] == a[:, j + delta]; pltpu.roll == np.roll
                    # (roll(a, s)[:, j] == a[:, j - s])  =>  s = -delta.
                    tap = pltpu.roll(a, (-delta) % L, 1) * mask_ref[t]
                tap_ref[t * cin:(t + 1) * cin, :] = tap
        stacked = tap_ref[0:9 * cin, :]              # (9*Cin, L)
        acc = jnp.dot(w_ref[...], stacked, preferred_element_type=f32)
        return jnp.maximum(acc + b_ref[...], 0.0)

    x = x_ref[...]                                   # (Cin_pad, Bt*HW), lane-dense
    a1 = conv3x3_relu(x, w1_ref, b1_ref)             # base_network.conv_forward
    a2 = conv3x3_relu(a1, w2_ref, b2_ref)            # conv extension block
    cmid = a2.shape[0]

    # base_network.fc_forward: per-image NCHW flatten (in-index = c*HW + p)
    # materialized once into the flat scratch -> ONE (Bt, cmid*HW) x
    # (cmid*HW, hidden) MXU dot (no serialized per-channel accumulation).
    for b in range(Bt):
        for c in range(cmid):
            flat_ref[b:b + 1, c * HW:(c + 1) * HW] = a2[c:c + 1, b * HW:(b + 1) * HW]
    h = jnp.dot(flat_ref[...], wf1_ref[...], preferred_element_type=f32) + bf1_ref[...]
    h = jnp.maximum(h, 0.0)

    # fc extension followed by F.relu (as in Deepened_Network.forward)
    h = jnp.maximum(
        jnp.dot(h, wf2_ref[...], preferred_element_type=f32) + bf2_ref[...], 0.0)

    # base_network.out_forward (no ReLU); lane-dense (Bt, 128) store
    out = jnp.dot(h, wo_ref[...], preferred_element_type=f32) + bo_ref[...]
    o_ref[0] = out.astype(o_ref.dtype)


# ----------------------------------------------------------------------------
# Deepened_Network.forward equivalent (wrapper: layout plumbing + one pallas_call)
# ----------------------------------------------------------------------------
def deepened_network_forward(params, x_nchw, *, images_per_step=None):
    B, Cin, H, W = x_nchw.shape
    HW = H * W
    f32 = jnp.float32

    cmid = params["conv1_w"].shape[0]
    hidden = params["fc1_w"].shape[0]
    nout = params["out_w"].shape[0]
    nout_pad = max(128, ((nout + 127) // 128) * 128)   # lane-dense output slab
    cin_pad = ((Cin + 7) // 8) * 8                     # sublane-aligned tap slabs

    # Batch-in-lanes packing: Bt images per grid step, lanes = Bt*HW.
    if images_per_step is None:
        images_per_step = max(1, min(B, 2048 // HW))
    Bt = int(images_per_step)
    num_tiles = -(-B // Bt)
    B_pad = num_tiles * Bt
    L = Bt * HW

    # Input: NCHW -> per-tile (Cin_pad, Bt*HW); channels on sublanes,
    # (image-major, spatial-minor) on lanes.
    x = x_nchw.astype(f32).reshape(B, Cin, HW)
    if B_pad != B:
        x = jnp.concatenate([x, jnp.zeros((B_pad - B, Cin, HW), f32)], axis=0)
    if cin_pad != Cin:
        x = jnp.concatenate([x, jnp.zeros((B_pad, cin_pad - Cin, HW), f32)], axis=1)
    x_k = jnp.transpose(x.reshape(num_tiles, Bt, cin_pad, HW),
                        (0, 2, 1, 3)).reshape(num_tiles * cin_pad, L)

    # Per-tap validity masks: implement zero padding AND zero out cross-image
    # wrap of the in-kernel lane roll.
    p = jnp.arange(HW)
    yy, xx = p // W, p % W
    masks = []
    for dy in (-1, 0, 1):
        for dx in (-1, 0, 1):
            masks.append((yy + dy >= 0) & (yy + dy < H) &
                         (xx + dx >= 0) & (xx + dx < W))
    mask = jnp.tile(jnp.stack(masks).astype(f32), (1, Bt)).reshape(9, 1, L)

    def conv_w(w, cin_to):  # PyTorch (Cout, Cin, 3, 3) -> (Cout, 9*cin_to), tap-major
        co, ci = w.shape[0], w.shape[1]
        w = w.astype(f32)
        if cin_to != ci:
            w = jnp.concatenate([w, jnp.zeros((co, cin_to - ci, 3, 3), f32)], axis=1)
        return jnp.transpose(w, (0, 2, 3, 1)).reshape(co, 9 * cin_to)

    w1 = conv_w(params["conv1_w"], cin_pad)
    b1 = params["conv1_b"].reshape(cmid, 1).astype(f32)
    w2 = conv_w(params["convext_w"], cmid)
    b2 = params["convext_b"].reshape(cmid, 1).astype(f32)
    # PyTorch Linear weight (out, in) with in-index = c*HW + p  ->  (cmid*HW, hidden)
    wf1 = jnp.transpose(params["fc1_w"]).astype(f32)
    bf1 = params["fc1_b"].reshape(1, hidden).astype(f32)
    wf2 = jnp.transpose(params["fcext_w"]).astype(f32)
    bf2 = params["fcext_b"].reshape(1, hidden).astype(f32)
    wo = jnp.zeros((hidden, nout_pad), f32).at[:, :nout].set(
        jnp.transpose(params["out_w"]).astype(f32))
    bo = jnp.zeros((1, nout_pad), f32).at[:, :nout].set(params["out_b"].astype(f32))

    operands = (x_k, mask, w1, b1, w2, b2, wf1, bf1, wf2, bf2, wo, bo)

    def const_spec(a):  # grid-invariant full-array VMEM block (fetched once)
        nd = a.ndim
        return pl.BlockSpec(tuple(a.shape), lambda i, _nd=nd: (0,) * _nd)

    in_specs = [pl.BlockSpec((cin_pad, L), lambda i: (i, 0))]   # per-tile input
    in_specs += [const_spec(a) for a in operands[1:]]

    flops = 2 * B_pad * HW * 9 * (cin_pad * cmid + cmid * cmid) \
        + 2 * B_pad * (cmid * HW * hidden + hidden * hidden + hidden * nout_pad)
    bytes_accessed = 4 * (sum(int(a.size) for a in operands)
                          + num_tiles * Bt * nout_pad)

    kernel = functools.partial(_fused_kernel, H=H, W=W, Bt=Bt)

    out = pl.pallas_call(
        kernel,
        out_shape=jax.ShapeDtypeStruct((num_tiles, Bt, nout_pad), f32),
        grid=(num_tiles,),
        in_specs=in_specs,
        out_specs=pl.BlockSpec((1, Bt, nout_pad), lambda i: (i, 0, 0)),
        scratch_shapes=[
            pltpu.VMEM((9 * max(cin_pad, cmid), L), f32),   # stacked conv taps
            pltpu.VMEM((Bt, cmid * HW), f32),               # NCHW-flattened a2
        ],
        compiler_params=pltpu.CompilerParams(
            dimension_semantics=("parallel",)),
        cost_estimate=pl.CostEstimate(
            flops=int(flops), transcendentals=0,
            bytes_accessed=int(bytes_accessed)),
    )(*operands)
    return out.reshape(B_pad, nout_pad)[:B, :nout]


# ----------------------------------------------------------------------------
# Pure-JAX reference of the same forward pass (for a correctness self-check)
# ----------------------------------------------------------------------------
def reference_forward(params, x_nchw):
    hp = lax.Precision.HIGHEST

    def conv_relu(x, w, b):
        y = lax.conv_general_dilated(
            x, w, window_strides=(1, 1), padding="SAME",
            dimension_numbers=("NCHW", "OIHW", "NCHW"), precision=hp)
        return jax.nn.relu(y + b[None, :, None, None])

    x = conv_relu(x_nchw, params["conv1_w"], params["conv1_b"])     # conv_forward
    x = conv_relu(x, params["convext_w"], params["convext_b"])      # conv extension
    x = x.reshape(x.shape[0], -1)                                   # fc_forward
    x = jax.nn.relu(jnp.dot(x, params["fc1_w"].T, precision=hp) + params["fc1_b"])
    x = jax.nn.relu(jnp.dot(x, params["fcext_w"].T, precision=hp) + params["fcext_b"])
    return jnp.dot(x, params["out_w"].T, precision=hp) + params["out_b"]


# ----------------------------------------------------------------------------
# Deterministic parameter init (PyTorch weight layouts) + driver
# ----------------------------------------------------------------------------
def init_params(key, cin, cmid, h, w, hidden, n_out):
    ks = jax.random.split(key, 10)

    def init(k, shape, scale=0.1):
        return (scale * jax.random.normal(k, shape)).astype(jnp.float32)

    return {
        "conv1_w": init(ks[0], (cmid, cin, 3, 3)),
        "conv1_b": init(ks[1], (cmid,)),
        "convext_w": init(ks[2], (cmid, cmid, 3, 3)),
        "convext_b": init(ks[3], (cmid,)),
        "fc1_w": init(ks[4], (hidden, cmid * h * w)),
        "fc1_b": init(ks[5], (hidden,)),
        "fcext_w": init(ks[6], (hidden, hidden)),
        "fcext_b": init(ks[7], (hidden,)),
        "out_w": init(ks[8], (n_out, hidden)),
        "out_b": init(ks[9], (n_out,)),
    }
    # TODO(synk): the HVG/HVN/HVE graph machinery and deepen()/hvg() registration
    # carry no forward-pass compute, so they are not represented in the kernel.


if __name__ == "__main__":
    B, CIN, H, W = 2, 4, 16, 16
    CMID, HIDDEN, NOUT = 8, 32, 10

    key = jax.random.PRNGKey(0)
    k_params, k_x = jax.random.split(key)
    params = init_params(k_params, CIN, CMID, H, W, HIDDEN, NOUT)
    x = jax.random.normal(k_x, (B, CIN, H, W), dtype=jnp.float32)  # NCHW like PyTorch

    fwd = jax.jit(deepened_network_forward)
    out = fwd(params, x)
    jax.block_until_ready(out)

    assert out.shape == (B, NOUT), out.shape
    assert bool(jnp.all(jnp.isfinite(out)))

    ref = reference_forward(params, x)
    np.testing.assert_allclose(np.asarray(out), np.asarray(ref), rtol=2e-2, atol=2e-2)
    print("KERNEL_OK")
</pallas_src>

<mosaic_0001>
module attributes {stable_mosaic.version = 11 : i64} {
  func.func @_fused_kernel(%arg0: i32, %arg1: memref<8x512xf32, #tpu.memory_space<vmem>>, %arg2: memref<9x1x512xf32, #tpu.memory_space<vmem>>, %arg3: memref<8x72xf32, #tpu.memory_space<vmem>>, %arg4: memref<8x1xf32, #tpu.memory_space<vmem>>, %arg5: memref<8x72xf32, #tpu.memory_space<vmem>>, %arg6: memref<8x1xf32, #tpu.memory_space<vmem>>, %arg7: memref<2048x32xf32, #tpu.memory_space<vmem>>, %arg8: memref<1x32xf32, #tpu.memory_space<vmem>>, %arg9: memref<32x32xf32, #tpu.memory_space<vmem>>, %arg10: memref<1x32xf32, #tpu.memory_space<vmem>>, %arg11: memref<32x128xf32, #tpu.memory_space<vmem>>, %arg12: memref<1x128xf32, #tpu.memory_space<vmem>>, %arg13: memref<1x2x128xf32, #tpu.memory_space<vmem>>, %arg14: memref<72x512xf32, #tpu.memory_space<vmem>>, %arg15: memref<2x2048xf32, #tpu.memory_space<vmem>>) attributes {dimension_semantics = [#tpu.dimension_semantics<parallel>], iteration_bounds = array<i64: 1>, scalar_prefetch = 0 : i64, scratch_operands = 2 : i64, tpu.core_type = #tpu.core_type<tc>, window_params = [{transform_indices = @transform_0, window_bounds = array<i64: 8, 512>}, {pipeline_mode = #tpu.pipeline_mode<synchronous>, transform_indices = @transform_1, window_bounds = array<i64: 9, 1, 512>}, {pipeline_mode = #tpu.pipeline_mode<synchronous>, transform_indices = @transform_2, window_bounds = array<i64: 8, 72>}, {pipeline_mode = #tpu.pipeline_mode<synchronous>, transform_indices = @transform_3, window_bounds = array<i64: 8, 1>}, {pipeline_mode = #tpu.pipeline_mode<synchronous>, transform_indices = @transform_4, window_bounds = array<i64: 8, 72>}, {pipeline_mode = #tpu.pipeline_mode<synchronous>, transform_indices = @transform_5, window_bounds = array<i64: 8, 1>}, {pipeline_mode = #tpu.pipeline_mode<synchronous>, transform_indices = @transform_6, window_bounds = array<i64: 2048, 32>}, {pipeline_mode = #tpu.pipeline_mode<synchronous>, transform_indices = @transform_7, window_bounds = array<i64: 1, 32>}, {pipeline_mode = #tpu.pipeline_mode<synchronous>, transform_indices = @transform_8, window_bounds = array<i64: 32, 32>}, {pipeline_mode = #tpu.pipeline_mode<synchronous>, transform_indices = @transform_9, window_bounds = array<i64: 1, 32>}, {pipeline_mode = #tpu.pipeline_mode<synchronous>, transform_indices = @transform_10, window_bounds = array<i64: 32, 128>}, {pipeline_mode = #tpu.pipeline_mode<synchronous>, transform_indices = @transform_11, window_bounds = array<i64: 1, 128>}, {transform_indices = @transform_12, window_bounds = array<i64: 1, 2, 128>}]} {
    %c0 = arith.constant 0 : index
    %c0_0 = arith.constant 0 : index
    %0 = vector.load %arg1[%c0, %c0_0] : memref<8x512xf32, #tpu.memory_space<vmem>>, vector<8x512xf32>
    %c17_i32 = arith.constant 17 : i32
    %1 = tpu.dynamic_rotate %0 by %c17_i32 dim 1 : vector<8x512xf32>, i32 -> vector<8x512xf32>
    %c0_1 = arith.constant 0 : index
    %c0_2 = arith.constant 0 : index
    %c0_3 = arith.constant 0 : index
    %2 = vector.load %arg2[%c0_1, %c0_2, %c0_3] : memref<9x1x512xf32, #tpu.memory_space<vmem>>, vector<1x1x512xf32>
    %3 = vector.shape_cast %2 : vector<1x1x512xf32> to vector<1x512xf32>
    %4 = vector.broadcast %3 : vector<1x512xf32> to vector<8x512xf32>
    %5 = arith.mulf %1, %4 : vector<8x512xf32>
    %c0_4 = arith.constant 0 : index
    %c0_5 = arith.constant 0 : index
    %6 = vector.load %arg14[%c0_4, %c0_5] : memref<72x512xf32, #tpu.memory_space<vmem>>, vector<8x512xf32>
    tpu.vector_store %arg14[%c0_4, %c0_5], %5 {strides = array<i32>} : memref<72x512xf32, #tpu.memory_space<vmem>>, vector<8x512xf32>,
    %c16_i32 = arith.constant 16 : i32
    %7 = tpu.dynamic_rotate %0 by %c16_i32 dim 1 : vector<8x512xf32>, i32 -> vector<8x512xf32>
    %c1 = arith.constant 1 : index
    %c0_6 = arith.constant 0 : index
    %c0_7 = arith.constant 0 : index
    %8 = vector.load %arg2[%c1, %c0_6, %c0_7] : memref<9x1x512xf32, #tpu.memory_space<vmem>>, vector<1x1x512xf32>
    %9 = vector.shape_cast %8 : vector<1x1x512xf32> to vector<1x512xf32>
    %10 = vector.broadcast %9 : vector<1x512xf32> to vector<8x512xf32>
    %11 = arith.mulf %7, %10 : vector<8x512xf32>
    %c8 = arith.constant 8 : index
    %c0_8 = arith.constant 0 : index
    %12 = vector.load %arg14[%c8, %c0_8] : memref<72x512xf32, #tpu.memory_space<vmem>>, vector<8x512xf32>
    tpu.vector_store %arg14[%c8, %c0_8], %11 {strides = array<i32>} : memref<72x512xf32, #tpu.memory_space<vmem>>, vector<8x512xf32>,
    %c15_i32 = arith.constant 15 : i32
    %13 = tpu.dynamic_rotate %0 by %c15_i32 dim 1 : vector<8x512xf32>, i32 -> vector<8x512xf32>
    %c2 = arith.constant 2 : index
    %c0_9 = arith.constant 0 : index
    %c0_10 = arith.constant 0 : index
    %14 = vector.load %arg2[%c2, %c0_9, %c0_10] : memref<9x1x512xf32, #tpu.memory_space<vmem>>, vector<1x1x512xf32>
    %15 = vector.shape_cast %14 : vector<1x1x512xf32> to vector<1x512xf32>
    %16 = vector.broadcast %15 : vector<1x512xf32> to vector<8x512xf32>
    %17 = arith.mulf %13, %16 : vector<8x512xf32>
    %c16 = arith.constant 16 : index
    %c0_11 = arith.constant 0 : index
    %18 = vector.load %arg14[%c16, %c0_11] : memref<72x512xf32, #tpu.memory_space<vmem>>, vector<8x512xf32>
    tpu.vector_store %arg14[%c16, %c0_11], %17 {strides = array<i32>} : memref<72x512xf32, #tpu.memory_space<vmem>>, vector<8x512xf32>,
    %c1_i32 = arith.constant 1 : i32
    %19 = tpu.dynamic_rotate %0 by %c1_i32 dim 1 : vector<8x512xf32>, i32 -> vector<8x512xf32>
    %c3 = arith.constant 3 : index
    %c0_12 = arith.constant 0 : index
    %c0_13 = arith.constant 0 : index
    %20 = vector.load %arg2[%c3, %c0_12, %c0_13] : memref<9x1x512xf32, #tpu.memory_space<vmem>>, vector<1x1x512xf32>
    %21 = vector.shape_cast %20 : vector<1x1x512xf32> to vector<1x512xf32>
    %22 = vector.broadcast %21 : vector<1x512xf32> to vector<8x512xf32>
    %23 = arith.mulf %19, %22 : vector<8x512xf32>
    %c24 = arith.constant 24 : index
    %c0_14 = arith.constant 0 : index
    %24 = vector.load %arg14[%c24, %c0_14] : memref<72x512xf32, #tpu.memory_space<vmem>>, vector<8x512xf32>
    tpu.vector_store %arg14[%c24, %c0_14], %23 {strides = array<i32>} : memref<72x512xf32, #tpu.memory_space<vmem>>, vector<8x512xf32>,
    %c32 = arith.constant 32 : index
    %c0_15 = arith.constant 0 : index
    %25 = vector.load %arg14[%c32, %c0_15] : memref<72x512xf32, #tpu.memory_space<vmem>>, vector<8x512xf32>
    tpu.vector_store %arg14[%c32, %c0_15], %0 {strides = array<i32>} : memref<72x512xf32, #tpu.memory_space<vmem>>, vector<8x512xf32>,
    %c511_i32 = arith.constant 511 : i32
    %26 = tpu.dynamic_rotate %0 by %c511_i32 dim 1 : vector<8x512xf32>, i32 -> vector<8x512xf32>
    %c5 = arith.constant 5 : index
    %c0_16 = arith.constant 0 : index
    %c0_17 = arith.constant 0 : index
    %27 = vector.load %arg2[%c5, %c0_16, %c0_17] : memref<9x1x512xf32, #tpu.memory_space<vmem>>, vector<1x1x512xf32>
    %28 = vector.shape_cast %27 : vector<1x1x512xf32> to vector<1x512xf32>
    %29 = vector.broadcast %28 : vector<1x512xf32> to vector<8x512xf32>
    %30 = arith.mulf %26, %29 : vector<8x512xf32>
    %c40 = arith.constant 40 : index
    %c0_18 = arith.constant 0 : index
    %31 = vector.load %arg14[%c40, %c0_18] : memref<72x512xf32, #tpu.memory_space<vmem>>, vector<8x512xf32>
    tpu.vector_store %arg14[%c40, %c0_18], %30 {strides = array<i32>} : memref<72x512xf32, #tpu.memory_space<vmem>>, vector<8x512xf32>,
    %c497_i32 = arith.constant 497 : i32
    %32 = tpu.dynamic_rotate %0 by %c497_i32 dim 1 : vector<8x512xf32>, i32 -> vector<8x512xf32>
    %c6 = arith.constant 6 : index
    %c0_19 = arith.constant 0 : index
    %c0_20 = arith.constant 0 : index
    %33 = vector.load %arg2[%c6, %c0_19, %c0_20] : memref<9x1x512xf32, #tpu.memory_space<vmem>>, vector<1x1x512xf32>
    %34 = vector.shape_cast %33 : vector<1x1x512xf32> to vector<1x512xf32>
    %35 = vector.broadcast %34 : vector<1x512xf32> to vector<8x512xf32>
    %36 = arith.mulf %32, %35 : vector<8x512xf32>
    %c48 = arith.constant 48 : index
    %c0_21 = arith.constant 0 : index
    %37 = vector.load %arg14[%c48, %c0_21] : memref<72x512xf32, #tpu.memory_space<vmem>>, vector<8x512xf32>
    tpu.vector_store %arg14[%c48, %c0_21], %36 {strides = array<i32>} : memref<72x512xf32, #tpu.memory_space<vmem>>, vector<8x512xf32>,
    %c496_i32 = arith.constant 496 : i32
    %38 = tpu.dynamic_rotate %0 by %c496_i32 dim 1 : vector<8x512xf32>, i32 -> vector<8x512xf32>
    %c7 = arith.constant 7 : index
    %c0_22 = arith.constant 0 : index
    %c0_23 = arith.constant 0 : index
    %39 = vector.load %arg2[%c7, %c0_22, %c0_23] : memref<9x1x512xf32, #tpu.memory_space<vmem>>, vector<1x1x512xf32>
    %40 = vector.shape_cast %39 : vector<1x1x512xf32> to vector<1x512xf32>
    %41 = vector.broadcast %40 : vector<1x512xf32> to vector<8x512xf32>
    %42 = arith.mulf %38, %41 : vector<8x512xf32>
    %c56 = arith.constant 56 : index
    %c0_24 = arith.constant 0 : index
    %43 = vector.load %arg14[%c56, %c0_24] : memref<72x512xf32, #tpu.memory_space<vmem>>, vector<8x512xf32>
    tpu.vector_store %arg14[%c56, %c0_24], %42 {strides = array<i32>} : memref<72x512xf32, #tpu.memory_space<vmem>>, vector<8x512xf32>,
    %c495_i32 = arith.constant 495 : i32
    %44 = tpu.dynamic_rotate %0 by %c495_i32 dim 1 : vector<8x512xf32>, i32 -> vector<8x512xf32>
    %c8_25 = arith.constant 8 : index
    %c0_26 = arith.constant 0 : index
    %c0_27 = arith.constant 0 : index
    %45 = vector.load %arg2[%c8_25, %c0_26, %c0_27] : memref<9x1x512xf32, #tpu.memory_space<vmem>>, vector<1x1x512xf32>
    %46 = vector.shape_cast %45 : vector<1x1x512xf32> to vector<1x512xf32>
    %47 = vector.broadcast %46 : vector<1x512xf32> to vector<8x512xf32>
    %48 = arith.mulf %44, %47 : vector<8x512xf32>
    %c64 = arith.constant 64 : index
    %c0_28 = arith.constant 0 : index
    %49 = vector.load %arg14[%c64, %c0_28] : memref<72x512xf32, #tpu.memory_space<vmem>>, vector<8x512xf32>
    tpu.vector_store %arg14[%c64, %c0_28], %48 {strides = array<i32>} : memref<72x512xf32, #tpu.memory_space<vmem>>, vector<8x512xf32>,
    %c0_29 = arith.constant 0 : index
    %c0_30 = arith.constant 0 : index
    %50 = vector.load %arg14[%c0_29, %c0_30] : memref<72x512xf32, #tpu.memory_space<vmem>>, vector<72x512xf32>
    %c0_31 = arith.constant 0 : index
    %c0_32 = arith.constant 0 : index
    %51 = vector.load %arg3[%c0_31, %c0_32] : memref<8x72xf32, #tpu.memory_space<vmem>>, vector<8x72xf32>
    %cst = arith.constant dense<0.000000e+00> : vector<8x512xf32>
    %52 = tpu.matmul %51, %50, %cst {dimension_numbers = #tpu.dot_dimension_numbers<[1], [0], [0], [1], [0, 0, 1, 1], [], []>} : vector<8x72xf32>, vector<72x512xf32>, vector<8x512xf32> -> vector<8x512xf32>
    %c0_33 = arith.constant 0 : index
    %c0_34 = arith.constant 0 : index
    %53 = vector.load %arg4[%c0_33, %c0_34] : memref<8x1xf32, #tpu.memory_space<vmem>>, vector<8x1xf32>
    %54 = vector.broadcast %53 : vector<8x1xf32> to vector<8x512xf32>
    %55 = arith.addf %52, %54 : vector<8x512xf32>
    %cst_35 = arith.constant 0.000000e+00 : f32
    %56 = vector.broadcast %cst_35 : f32 to vector<8x512xf32>
    %57 = arith.maximumf %55, %56 : vector<8x512xf32>
    %c17_i32_36 = arith.constant 17 : i32
    %58 = tpu.dynamic_rotate %57 by %c17_i32_36 dim 1 : vector<8x512xf32>, i32 -> vector<8x512xf32>
    %c0_37 = arith.constant 0 : index
    %c0_38 = arith.constant 0 : index
    %c0_39 = arith.constant 0 : index
    %59 = vector.load %arg2[%c0_37, %c0_38, %c0_39] : memref<9x1x512xf32, #tpu.memory_space<vmem>>, vector<1x1x512xf32>
    %60 = vector.shape_cast %59 : vector<1x1x512xf32> to vector<1x512xf32>
    %61 = vector.broadcast %60 : vector<1x512xf32> to vector<8x512xf32>
    %62 = arith.mulf %58, %61 : vector<8x512xf32>
    %c0_40 = arith.constant 0 : index
    %c0_41 = arith.constant 0 : index
    %63 = vector.load %arg14[%c0_40, %c0_41] : memref<72x512xf32, #tpu.memory_space<vmem>>, vector<8x512xf32>
    tpu.vector_store %arg14[%c0_40, %c0_41], %62 {strides = array<i32>} : memref<72x512xf32, #tpu.memory_space<vmem>>, vector<8x512xf32>,
    %c16_i32_42 = arith.constant 16 : i32
    %64 = tpu.dynamic_rotate %57 by %c16_i32_42 dim 1 : vector<8x512xf32>, i32 -> vector<8x512xf32>
    %c1_43 = arith.constant 1 : index
    %c0_44 = arith.constant 0 : index
    %c0_45 = arith.constant 0 : index
    %65 = vector.load %arg2[%c1_43, %c0_44, %c0_45] : memref<9x1x512xf32, #tpu.memory_space<vmem>>, vector<1x1x512xf32>
    %66 = vector.shape_cast %65 : vector<1x1x512xf32> to vector<1x512xf32>
    %67 = vector.broadcast %66 : vector<1x512xf32> to vector<8x512xf32>
    %68 = arith.mulf %64, %67 : vector<8x512xf32>
    %c8_46 = arith.constant 8 : index
    %c0_47 = arith.constant 0 : index
    %69 = vector.load %arg14[%c8_46, %c0_47] : memref<72x512xf32, #tpu.memory_space<vmem>>, vector<8x512xf32>
    tpu.vector_store %arg14[%c8_46, %c0_47], %68 {strides = array<i32>} : memref<72x512xf32, #tpu.memory_space<vmem>>, vector<8x512xf32>,
    %c15_i32_48 = arith.constant 15 : i32
    %70 = tpu.dynamic_rotate %57 by %c15_i32_48 dim 1 : vector<8x512xf32>, i32 -> vector<8x512xf32>
    %c2_49 = arith.constant 2 : index
    %c0_50 = arith.constant 0 : index
    %c0_51 = arith.constant 0 : index
    %71 = vector.load %arg2[%c2_49, %c0_50, %c0_51] : memref<9x1x512xf32, #tpu.memory_space<vmem>>, vector<1x1x512xf32>
    %72 = vector.shape_cast %71 : vector<1x1x512xf32> to vector<1x512xf32>
    %73 = vector.broadcast %72 : vector<1x512xf32> to vector<8x512xf32>
    %74 = arith.mulf %70, %73 : vector<8x512xf32>
    %c16_52 = arith.constant 16 : index
    %c0_53 = arith.constant 0 : index
    %75 = vector.load %arg14[%c16_52, %c0_53] : memref<72x512xf32, #tpu.memory_space<vmem>>, vector<8x512xf32>
    tpu.vector_store %arg14[%c16_52, %c0_53], %74 {strides = array<i32>} : memref<72x512xf32, #tpu.memory_space<vmem>>, vector<8x512xf32>,
    %c1_i32_54 = arith.constant 1 : i32
    %76 = tpu.dynamic_rotate %57 by %c1_i32_54 dim 1 : vector<8x512xf32>, i32 -> vector<8x512xf32>
    %c3_55 = arith.constant 3 : index
    %c0_56 = arith.constant 0 : index
    %c0_57 = arith.constant 0 : index
    %77 = vector.load %arg2[%c3_55, %c0_56, %c0_57] : memref<9x1x512xf32, #tpu.memory_space<vmem>>, vector<1x1x512xf32>
    %78 = vector.shape_cast %77 : vector<1x1x512xf32> to vector<1x512xf32>
    %79 = vector.broadcast %78 : vector<1x512xf32> to vector<8x512xf32>
    %80 = arith.mulf %76, %79 : vector<8x512xf32>
    %c24_58 = arith.constant 24 : index
    %c0_59 = arith.constant 0 : index
    %81 = vector.load %arg14[%c24_58, %c0_59] : memref<72x512xf32, #tpu.memory_space<vmem>>, vector<8x512xf32>
    tpu.vector_store %arg14[%c24_58, %c0_59], %80 {strides = array<i32>} : memref<72x512xf32, #tpu.memory_space<vmem>>, vector<8x512xf32>,
    %c32_60 = arith.constant 32 : index
    %c0_61 = arith.constant 0 : index
    %82 = vector.load %arg14[%c32_60, %c0_61] : memref<72x512xf32, #tpu.memory_space<vmem>>, vector<8x512xf32>
    tpu.vector_store %arg14[%c32_60, %c0_61], %57 {strides = array<i32>} : memref<72x512xf32, #tpu.memory_space<vmem>>, vector<8x512xf32>,
    %c511_i32_62 = arith.constant 511 : i32
    %83 = tpu.dynamic_rotate %57 by %c511_i32_62 dim 1 : vector<8x512xf32>, i32 -> vector<8x512xf32>
    %c5_63 = arith.constant 5 : index
    %c0_64 = arith.constant 0 : index
    %c0_65 = arith.constant 0 : index
    %84 = vector.load %arg2[%c5_63, %c0_64, %c0_65] : memref<9x1x512xf32, #tpu.memory_space<vmem>>, vector<1x1x512xf32>
    %85 = vector.shape_cast %84 : vector<1x1x512xf32> to vector<1x512xf32>
    %86 = vector.broadcast %85 : vector<1x512xf32> to vector<8x512xf32>
    %87 = arith.mulf %83, %86 : vector<8x512xf32>
    %c40_66 = arith.constant 40 : index
    %c0_67 = arith.constant 0 : index
    %88 = vector.load %arg14[%c40_66, %c0_67] : memref<72x512xf32, #tpu.memory_space<vmem>>, vector<8x512xf32>
    tpu.vector_store %arg14[%c40_66, %c0_67], %87 {strides = array<i32>} : memref<72x512xf32, #tpu.memory_space<vmem>>, vector<8x512xf32>,
    %c497_i32_68 = arith.constant 497 : i32
    %89 = tpu.dynamic_rotate %57 by %c497_i32_68 dim 1 : vector<8x512xf32>, i32 -> vector<8x512xf32>
    %c6_69 = arith.constant 6 : index
    %c0_70 = arith.constant 0 : index
    %c0_71 = arith.constant 0 : index
    %90 = vector.load %arg2[%c6_69, %c0_70, %c0_71] : memref<9x1x512xf32, #tpu.memory_space<vmem>>, vector<1x1x512xf32>
    %91 = vector.shape_cast %90 : vector<1x1x512xf32> to vector<1x512xf32>
    %92 = vector.broadcast %91 : vector<1x512xf32> to vector<8x512xf32>
    %93 = arith.mulf %89, %92 : vector<8x512xf32>
    %c48_72 = arith.constant 48 : index
    %c0_73 = arith.constant 0 : index
    %94 = vector.load %arg14[%c48_72, %c0_73] : memref<72x512xf32, #tpu.memory_space<vmem>>, vector<8x512xf32>
    tpu.vector_store %arg14[%c48_72, %c0_73], %93 {strides = array<i32>} : memref<72x512xf32, #tpu.memory_space<vmem>>, vector<8x512xf32>,
    %c496_i32_74 = arith.constant 496 : i32
    %95 = tpu.dynamic_rotate %57 by %c496_i32_74 dim 1 : vector<8x512xf32>, i32 -> vector<8x512xf32>
    %c7_75 = arith.constant 7 : index
    %c0_76 = arith.constant 0 : index
    %c0_77 = arith.constant 0 : index
    %96 = vector.load %arg2[%c7_75, %c0_76, %c0_77] : memref<9x1x512xf32, #tpu.memory_space<vmem>>, vector<1x1x512xf32>
    %97 = vector.shape_cast %96 : vector<1x1x512xf32> to vector<1x512xf32>
    %98 = vector.broadcast %97 : vector<1x512xf32> to vector<8x512xf32>
    %99 = arith.mulf %95, %98 : vector<8x512xf32>
    %c56_78 = arith.constant 56 : index
    %c0_79 = arith.constant 0 : index
    %100 = vector.load %arg14[%c56_78, %c0_79] : memref<72x512xf32, #tpu.memory_space<vmem>>, vector<8x512xf32>
    tpu.vector_store %arg14[%c56_78, %c0_79], %99 {strides = array<i32>} : memref<72x512xf32, #tpu.memory_space<vmem>>, vector<8x512xf32>,
    %c495_i32_80 = arith.constant 495 : i32
    %101 = tpu.dynamic_rotate %57 by %c495_i32_80 dim 1 : vector<8x512xf32>, i32 -> vector<8x512xf32>
    %c8_81 = arith.constant 8 : index
    %c0_82 = arith.constant 0 : index
    %c0_83 = arith.constant 0 : index
    %102 = vector.load %arg2[%c8_81, %c0_82, %c0_83] : memref<9x1x512xf32, #tpu.memory_space<vmem>>, vector<1x1x512xf32>
    %103 = vector.shape_cast %102 : vector<1x1x512xf32> to vector<1x512xf32>
    %104 = vector.broadcast %103 : vector<1x512xf32> to vector<8x512xf32>
    %105 = arith.mulf %101, %104 : vector<8x512xf32>
    %c64_84 = arith.constant 64 : index
    %c0_85 = arith.constant 0 : index
    %106 = vector.load %arg14[%c64_84, %c0_85] : memref<72x512xf32, #tpu.memory_space<vmem>>, vector<8x512xf32>
    tpu.vector_store %arg14[%c64_84, %c0_85], %105 {strides = array<i32>} : memref<72x512xf32, #tpu.memory_space<vmem>>, vector<8x512xf32>,
    %c0_86 = arith.constant 0 : index
    %c0_87 = arith.constant 0 : index
    %107 = vector.load %arg14[%c0_86, %c0_87] : memref<72x512xf32, #tpu.memory_space<vmem>>, vector<72x512xf32>
    %c0_88 = arith.constant 0 : index
    %c0_89 = arith.constant 0 : index
    %108 = vector.load %arg5[%c0_88, %c0_89] : memref<8x72xf32, #tpu.memory_space<vmem>>, vector<8x72xf32>
    %cst_90 = arith.constant dense<0.000000e+00> : vector<8x512xf32>
    %109 = tpu.matmul %108, %107, %cst_90 {dimension_numbers = #tpu.dot_dimension_numbers<[1], [0], [0], [1], [0, 0, 1, 1], [], []>} : vector<8x72xf32>, vector<72x512xf32>, vector<8x512xf32> -> vector<8x512xf32>
    %c0_91 = arith.constant 0 : index
    %c0_92 = arith.constant 0 : index
    %110 = vector.load %arg6[%c0_91, %c0_92] : memref<8x1xf32, #tpu.memory_space<vmem>>, vector<8x1xf32>
    %111 = vector.broadcast %110 : vector<8x1xf32> to vector<8x512xf32>
    %112 = arith.addf %109, %111 : vector<8x512xf32>
    %cst_93 = arith.constant 0.000000e+00 : f32
    %113 = vector.broadcast %cst_93 : f32 to vector<8x512xf32>
    %114 = arith.maximumf %112, %113 : vector<8x512xf32>
    %115 = vector.extract_strided_slice %114 {offsets = [0, 0], sizes = [1, 256], strides = [1, 1]} : vector<8x512xf32> to vector<1x256xf32>
    %c0_94 = arith.constant 0 : index
    %c0_95 = arith.constant 0 : index
    %116 = vector.load %arg15[%c0_94, %c0_95] : memref<2x2048xf32, #tpu.memory_space<vmem>>, vector<1x256xf32>
    tpu.vector_store %arg15[%c0_94, %c0_95], %115 {strides = array<i32>} : memref<2x2048xf32, #tpu.memory_space<vmem>>, vector<1x256xf32>,
    %117 = vector.extract_strided_slice %114 {offsets = [1, 0], sizes = [1, 256], strides = [1, 1]} : vector<8x512xf32> to vector<1x256xf32>
    %c0_96 = arith.constant 0 : index
    %c256 = arith.constant 256 : index
    %118 = vector.load %arg15[%c0_96, %c256] : memref<2x2048xf32, #tpu.memory_space<vmem>>, vector<1x256xf32>
    tpu.vector_store %arg15[%c0_96, %c256], %117 {strides = array<i32>} : memref<2x2048xf32, #tpu.memory_space<vmem>>, vector<1x256xf32>,
    %119 = vector.extract_strided_slice %114 {offsets = [2, 0], sizes = [1, 256], strides = [1, 1]} : vector<8x512xf32> to vector<1x256xf32>
    %c0_97 = arith.constant 0 : index
    %c512 = arith.constant 512 : index
    %120 = vector.load %arg15[%c0_97, %c512] : memref<2x2048xf32, #tpu.memory_space<vmem>>, vector<1x256xf32>
    tpu.vector_store %arg15[%c0_97, %c512], %119 {strides = array<i32>} : memref<2x2048xf32, #tpu.memory_space<vmem>>, vector<1x256xf32>,
    %121 = vector.extract_strided_slice %114 {offsets = [3, 0], sizes = [1, 256], strides = [1, 1]} : vector<8x512xf32> to vector<1x256xf32>
    %c0_98 = arith.constant 0 : index
    %c768 = arith.constant 768 : index
    %122 = vector.load %arg15[%c0_98, %c768] : memref<2x2048xf32, #tpu.memory_space<vmem>>, vector<1x256xf32>
    tpu.vector_store %arg15[%c0_98, %c768], %121 {strides = array<i32>} : memref<2x2048xf32, #tpu.memory_space<vmem>>, vector<1x256xf32>,
    %123 = vector.extract_strided_slice %114 {offsets = [4, 0], sizes = [1, 256], strides = [1, 1]} : vector<8x512xf32> to vector<1x256xf32>
    %c0_99 = arith.constant 0 : index
    %c1024 = arith.constant 1024 : index
    %124 = vector.load %arg15[%c0_99, %c1024] : memref<2x2048xf32, #tpu.memory_space<vmem>>, vector<1x256xf32>
    tpu.vector_store %arg15[%c0_99, %c1024], %123 {strides = array<i32>} : memref<2x2048xf32, #tpu.memory_space<vmem>>, vector<1x256xf32>,
    %125 = vector.extract_strided_slice %114 {offsets = [5, 0], sizes = [1, 256], strides = [1, 1]} : vector<8x512xf32> to vector<1x256xf32>
    %c0_100 = arith.constant 0 : index
    %c1280 = arith.constant 1280 : index
    %126 = vector.load %arg15[%c0_100, %c1280] : memref<2x2048xf32, #tpu.memory_space<vmem>>, vector<1x256xf32>
    tpu.vector_store %arg15[%c0_100, %c1280], %125 {strides = array<i32>} : memref<2x2048xf32, #tpu.memory_space<vmem>>, vector<1x256xf32>,
    %127 = vector.extract_strided_slice %114 {offsets = [6, 0], sizes = [1, 256], strides = [1, 1]} : vector<8x512xf32> to vector<1x256xf32>
    %c0_101 = arith.constant 0 : index
    %c1536 = arith.constant 1536 : index
    %128 = vector.load %arg15[%c0_101, %c1536] : memref<2x2048xf32, #tpu.memory_space<vmem>>, vector<1x256xf32>
    tpu.vector_store %arg15[%c0_101, %c1536], %127 {strides = array<i32>} : memref<2x2048xf32, #tpu.memory_space<vmem>>, vector<1x256xf32>,
    %129 = vector.extract_strided_slice %114 {offsets = [7, 0], sizes = [1, 256], strides = [1, 1]} : vector<8x512xf32> to vector<1x256xf32>
    %c0_102 = arith.constant 0 : index
    %c1792 = arith.constant 1792 : index
    %130 = vector.load %arg15[%c0_102, %c1792] : memref<2x2048xf32, #tpu.memory_space<vmem>>, vector<1x256xf32>
    tpu.vector_store %arg15[%c0_102, %c1792], %129 {strides = array<i32>} : memref<2x2048xf32, #tpu.memory_space<vmem>>, vector<1x256xf32>,
    %131 = vector.extract_strided_slice %114 {offsets = [0, 256], sizes = [1, 256], strides = [1, 1]} : vector<8x512xf32> to vector<1x256xf32>
    %c1_103 = arith.constant 1 : index
    %c0_104 = arith.constant 0 : index
    %132 = vector.load %arg15[%c1_103, %c0_104] : memref<2x2048xf32, #tpu.memory_space<vmem>>, vector<1x256xf32>
    tpu.vector_store %arg15[%c1_103, %c0_104], %131 {strides = array<i32>} : memref<2x2048xf32, #tpu.memory_space<vmem>>, vector<1x256xf32>,
    %133 = vector.extract_strided_slice %114 {offsets = [1, 256], sizes = [1, 256], strides = [1, 1]} : vector<8x512xf32> to vector<1x256xf32>
    %c1_105 = arith.constant 1 : index
    %c256_106 = arith.constant 256 : index
    %134 = vector.load %arg15[%c1_105, %c256_106] : memref<2x2048xf32, #tpu.memory_space<vmem>>, vector<1x256xf32>
    tpu.vector_store %arg15[%c1_105, %c256_106], %133 {strides = array<i32>} : memref<2x2048xf32, #tpu.memory_space<vmem>>, vector<1x256xf32>,
    %135 = vector.extract_strided_slice %114 {offsets = [2, 256], sizes = [1, 256], strides = [1, 1]} : vector<8x512xf32> to vector<1x256xf32>
    %c1_107 = arith.constant 1 : index
    %c512_108 = arith.constant 512 : index
    %136 = vector.load %arg15[%c1_107, %c512_108] : memref<2x2048xf32, #tpu.memory_space<vmem>>, vector<1x256xf32>
    tpu.vector_store %arg15[%c1_107, %c512_108], %135 {strides = array<i32>} : memref<2x2048xf32, #tpu.memory_space<vmem>>, vector<1x256xf32>,
    %137 = vector.extract_strided_slice %114 {offsets = [3, 256], sizes = [1, 256], strides = [1, 1]} : vector<8x512xf32> to vector<1x256xf32>
    %c1_109 = arith.constant 1 : index
    %c768_110 = arith.constant 768 : index
    %138 = vector.load %arg15[%c1_109, %c768_110] : memref<2x2048xf32, #tpu.memory_space<vmem>>, vector<1x256xf32>
    tpu.vector_store %arg15[%c1_109, %c768_110], %137 {strides = array<i32>} : memref<2x2048xf32, #tpu.memory_space<vmem>>, vector<1x256xf32>,
    %139 = vector.extract_strided_slice %114 {offsets = [4, 256], sizes = [1, 256], strides = [1, 1]} : vector<8x512xf32> to vector<1x256xf32>
    %c1_111 = arith.constant 1 : index
    %c1024_112 = arith.constant 1024 : index
    %140 = vector.load %arg15[%c1_111, %c1024_112] : memref<2x2048xf32, #tpu.memory_space<vmem>>, vector<1x256xf32>
    tpu.vector_store %arg15[%c1_111, %c1024_112], %139 {strides = array<i32>} : memref<2x2048xf32, #tpu.memory_space<vmem>>, vector<1x256xf32>,
    %141 = vector.extract_strided_slice %114 {offsets = [5, 256], sizes = [1, 256], strides = [1, 1]} : vector<8x512xf32> to vector<1x256xf32>
    %c1_113 = arith.constant 1 : index
    %c1280_114 = arith.constant 1280 : index
    %142 = vector.load %arg15[%c1_113, %c1280_114] : memref<2x2048xf32, #tpu.memory_space<vmem>>, vector<1x256xf32>
    tpu.vector_store %arg15[%c1_113, %c1280_114], %141 {strides = array<i32>} : memref<2x2048xf32, #tpu.memory_space<vmem>>, vector<1x256xf32>,
    %143 = vector.extract_strided_slice %114 {offsets = [6, 256], sizes = [1, 256], strides = [1, 1]} : vector<8x512xf32> to vector<1x256xf32>
    %c1_115 = arith.constant 1 : index
    %c1536_116 = arith.constant 1536 : index
    %144 = vector.load %arg15[%c1_115, %c1536_116] : memref<2x2048xf32, #tpu.memory_space<vmem>>, vector<1x256xf32>
    tpu.vector_store %arg15[%c1_115, %c1536_116], %143 {strides = array<i32>} : memref<2x2048xf32, #tpu.memory_space<vmem>>, vector<1x256xf32>,
    %145 = vector.extract_strided_slice %114 {offsets = [7, 256], sizes = [1, 256], strides = [1, 1]} : vector<8x512xf32> to vector<1x256xf32>
    %c1_117 = arith.constant 1 : index
    %c1792_118 = arith.constant 1792 : index
    %146 = vector.load %arg15[%c1_117, %c1792_118] : memref<2x2048xf32, #tpu.memory_space<vmem>>, vector<1x256xf32>
    tpu.vector_store %arg15[%c1_117, %c1792_118], %145 {strides = array<i32>} : memref<2x2048xf32, #tpu.memory_space<vmem>>, vector<1x256xf32>,
    %c0_119 = arith.constant 0 : index
    %c0_120 = arith.constant 0 : index
    %147 = vector.load %arg15[%c0_119, %c0_120] : memref<2x2048xf32, #tpu.memory_space<vmem>>, vector<2x2048xf32>
    %c0_121 = arith.constant 0 : index
    %c0_122 = arith.constant 0 : index
    %148 = vector.load %arg7[%c0_121, %c0_122] : memref<2048x32xf32, #tpu.memory_space<vmem>>, vector<2048x32xf32>
    %cst_123 = arith.constant dense<0.000000e+00> : vector<2x32xf32>
    %149 = tpu.matmul %147, %148, %cst_123 {dimension_numbers = #tpu.dot_dimension_numbers<[1], [0], [0], [1], [0, 0, 1, 1], [], []>} : vector<2x2048xf32>, vector<2048x32xf32>, vector<2x32xf32> -> vector<2x32xf32>
    %c0_124 = arith.constant 0 : index
    %c0_125 = arith.constant 0 : index
    %150 = vector.load %arg8[%c0_124, %c0_125] : memref<1x32xf32, #tpu.memory_space<vmem>>, vector<1x32xf32>
    %151 = vector.broadcast %150 : vector<1x32xf32> to vector<2x32xf32>
    %152 = arith.addf %149, %151 : vector<2x32xf32>
    %cst_126 = arith.constant 0.000000e+00 : f32
    %153 = vector.broadcast %cst_126 : f32 to vector<2x32xf32>
    %154 = arith.maximumf %152, %153 : vector<2x32xf32>
    %c0_127 = arith.constant 0 : index
    %c0_128 = arith.constant 0 : index
    %155 = vector.load %arg9[%c0_127, %c0_128] : memref<32x32xf32, #tpu.memory_space<vmem>>, vector<32x32xf32>
    %cst_129 = arith.constant dense<0.000000e+00> : vector<2x32xf32>
    %156 = tpu.matmul %154, %155, %cst_129 {dimension_numbers = #tpu.dot_dimension_numbers<[1], [0], [0], [1], [0, 0, 1, 1], [], []>} : vector<2x32xf32>, vector<32x32xf32>, vector<2x32xf32> -> vector<2x32xf32>
    %c0_130 = arith.constant 0 : index
    %c0_131 = arith.constant 0 : index
    %157 = vector.load %arg10[%c0_130, %c0_131] : memref<1x32xf32, #tpu.memory_space<vmem>>, vector<1x32xf32>
    %158 = vector.broadcast %157 : vector<1x32xf32> to vector<2x32xf32>
    %159 = arith.addf %156, %158 : vector<2x32xf32>
    %cst_132 = arith.constant 0.000000e+00 : f32
    %160 = vector.broadcast %cst_132 : f32 to vector<2x32xf32>
    %161 = arith.maximumf %159, %160 : vector<2x32xf32>
    %c0_133 = arith.constant 0 : index
    %c0_134 = arith.constant 0 : index
    %162 = vector.load %arg11[%c0_133, %c0_134] : memref<32x128xf32, #tpu.memory_space<vmem>>, vector<32x128xf32>
    %cst_135 = arith.constant dense<0.000000e+00> : vector<2x128xf32>
    %163 = tpu.matmul %161, %162, %cst_135 {dimension_numbers = #tpu.dot_dimension_numbers<[1], [0], [0], [1], [0, 0, 1, 1], [], []>} : vector<2x32xf32>, vector<32x128xf32>, vector<2x128xf32> -> vector<2x128xf32>
    %c0_136 = arith.constant 0 : index
    %c0_137 = arith.constant 0 : index
    %164 = vector.load %arg12[%c0_136, %c0_137] : memref<1x128xf32, #tpu.memory_space<vmem>>, vector<1x128xf32>
    %165 = vector.broadcast %164 : vector<1x128xf32> to vector<2x128xf32>
    %166 = arith.addf %163, %165 : vector<2x128xf32>
    %c0_138 = arith.constant 0 : index
    %c0_139 = arith.constant 0 : index
    %c0_140 = arith.constant 0 : index
    %167 = vector.load %arg13[%c0_138, %c0_139, %c0_140] : memref<1x2x128xf32, #tpu.memory_space<vmem>>, vector<1x2x128xf32>
    %168 = vector.shape_cast %167 : vector<1x2x128xf32> to vector<2x128xf32>
    %169 = vector.shape_cast %166 : vector<2x128xf32> to vector<1x2x128xf32>
    tpu.vector_store %arg13[%c0_138, %c0_139, %c0_140], %169 {strides = array<i32>} : memref<1x2x128xf32, #tpu.memory_space<vmem>>, vector<1x2x128xf32>,
    return
  }
  func.func @transform_0(%arg0: i32) -> (i32, i32) {
    %c0_i32 = arith.constant 0 : i32
    %c0_i32_0 = arith.constant 0 : i32
    return %arg0, %c0_i32 : i32, i32
  }
  func.func @transform_1(%arg0: i32) -> (i32, i32, i32) {
    %c0_i32 = arith.constant 0 : i32
    %c0_i32_0 = arith.constant 0 : i32
    %c0_i32_1 = arith.constant 0 : i32
    %c0_i32_2 = arith.constant 0 : i32
    return %c0_i32, %c0_i32_0, %c0_i32_1 : i32, i32, i32
  }
  func.func @transform_2(%arg0: i32) -> (i32, i32) {
    %c0_i32 = arith.constant 0 : i32
    %c0_i32_0 = arith.constant 0 : i32
    %c0_i32_1 = arith.constant 0 : i32
    return %c0_i32, %c0_i32_0 : i32, i32
  }
  func.func @transform_3(%arg0: i32) -> (i32, i32) {
    %c0_i32 = arith.constant 0 : i32
    %c0_i32_0 = arith.constant 0 : i32
    %c0_i32_1 = arith.constant 0 : i32
    return %c0_i32, %c0_i32_0 : i32, i32
  }
  func.func @transform_4(%arg0: i32) -> (i32, i32) {
    %c0_i32 = arith.constant 0 : i32
    %c0_i32_0 = arith.constant 0 : i32
    %c0_i32_1 = arith.constant 0 : i32
    return %c0_i32, %c0_i32_0 : i32, i32
  }
  func.func @transform_5(%arg0: i32) -> (i32, i32) {
    %c0_i32 = arith.constant 0 : i32
    %c0_i32_0 = arith.constant 0 : i32
    %c0_i32_1 = arith.constant 0 : i32
    return %c0_i32, %c0_i32_0 : i32, i32
  }
  func.func @transform_6(%arg0: i32) -> (i32, i32) {
    %c0_i32 = arith.constant 0 : i32
    %c0_i32_0 = arith.constant 0 : i32
    %c0_i32_1 = arith.constant 0 : i32
    return %c0_i32, %c0_i32_0 : i32, i32
  }
  func.func @transform_7(%arg0: i32) -> (i32, i32) {
    %c0_i32 = arith.constant 0 : i32
    %c0_i32_0 = arith.constant 0 : i32
    %c0_i32_1 = arith.constant 0 : i32
    return %c0_i32, %c0_i32_0 : i32, i32
  }
  func.func @transform_8(%arg0: i32) -> (i32, i32) {
    %c0_i32 = arith.constant 0 : i32
    %c0_i32_0 = arith.constant 0 : i32
    %c0_i32_1 = arith.constant 0 : i32
    return %c0_i32, %c0_i32_0 : i32, i32
  }
  func.func @transform_9(%arg0: i32) -> (i32, i32) {
    %c0_i32 = arith.constant 0 : i32
    %c0_i32_0 = arith.constant 0 : i32
    %c0_i32_1 = arith.constant 0 : i32
    return %c0_i32, %c0_i32_0 : i32, i32
  }
  func.func @transform_10(%arg0: i32) -> (i32, i32) {
    %c0_i32 = arith.constant 0 : i32
    %c0_i32_0 = arith.constant 0 : i32
    %c0_i32_1 = arith.constant 0 : i32
    return %c0_i32, %c0_i32_0 : i32, i32
  }
  func.func @transform_11(%arg0: i32) -> (i32, i32) {
    %c0_i32 = arith.constant 0 : i32
    %c0_i32_0 = arith.constant 0 : i32
    %c0_i32_1 = arith.constant 0 : i32
    return %c0_i32, %c0_i32_0 : i32, i32
  }
  func.func @transform_12(%arg0: i32) -> (i32, i32, i32) {
    %c0_i32 = arith.constant 0 : i32
    %c0_i32_0 = arith.constant 0 : i32
    %c0_i32_1 = arith.constant 0 : i32
    return %arg0, %c0_i32, %c0_i32_0 : i32, i32, i32
  }
}

</mosaic_0001>

<llo_original>
// kernel: deepened_network_forward.1
$region0: #{deepened_network_forward.1}
  #allocation0 [shape = 'u32[]', space=smem, size = 0x4, offset = 0x4, fixed_abs, tag = 'smem constant byte address 0x4 - core index']
  #allocation1 [shape = 'u32[144,128]{1,0:T(1,128)}', space=vmem, size = 0x12000, scoped, tag = 'internal scratch']
  #allocation2 [shape = 'f32[72,512]{1,0:T(8,128)}', space=vmem, size = 0x24000, scoped, tag = 'scratch operand']
  #allocation3 [shape = 'f32[2,2048]{1,0:T(2,128)}', space=vmem, size = 0x4000, scoped, tag = 'scratch operand']
  %s0 = inlined_call_operand.vmem [shape: f32[8,512], index: 0, kind: input, shape index: {}]
  %s1 = inlined_call_operand.vmem [shape: f32[9,1,512], index: 1, kind: input, shape index: {}]
  %s2 = inlined_call_operand.vmem [shape: f32[8,72], index: 2, kind: input, shape index: {}]
  %s3 = inlined_call_operand.vmem [shape: f32[8,1], index: 3, kind: input, shape index: {}]
  %s4 = inlined_call_operand.vmem [shape: f32[8,72], index: 4, kind: input, shape index: {}]
  %s5 = inlined_call_operand.vmem [shape: f32[8,1], index: 5, kind: input, shape index: {}]
  %s6 = inlined_call_operand.vmem [shape: f32[2048,32], index: 6, kind: input, shape index: {}]
  %s7 = inlined_call_operand.vmem [shape: f32[1,32], index: 7, kind: input, shape index: {}]
  %s8 = inlined_call_operand.vmem [shape: f32[32,32], index: 8, kind: input, shape index: {}]
  %s9 = inlined_call_operand.vmem [shape: f32[1,32], index: 9, kind: input, shape index: {}]
  %s10 = inlined_call_operand.vmem [shape: f32[32,128], index: 10, kind: input, shape index: {}]
  %s11 = inlined_call_operand.vmem [shape: f32[1,128], index: 11, kind: input, shape index: {}]
  %s12 = inlined_call_operand.hbm [shape: f32[1,2,128], index: 12, kind: output, shape index: {}]
  %s13 = sld [smem:[#allocation0]]
  $region58: #{deepened_network_forward.1} parent=0
    _
  %s15 = ssub.s32 1, %s13
  %s16 = scalar_select 0, %s15, %s13
  $region1: #{deepened_network_forward.1} parent=0
    #allocation4 [shape = 'u8[1024]{0}', space=vmem, size = 0x400, scoped, tag = 'output window, operand 0, single buffered']
    #allocation5 [shape = 's32[1]{0}', space=sflag, size = 0x4, scoped, tag = 'scoped memory for deepened_network_forward.1']
    %17 = vsyncpa [#allocation5], 0
    // Predicated region
    $region2: #{deepened_network_forward.1} parent=1 // pred_check
      _
    $region3: #{deepened_network_forward.1} parent=1 // pred_check_branch
      %19 = sbr.rel (0) target = $region5
    $region4: #{deepened_network_forward.1} parent=1 // pred_region
      _
    $region5: #{deepened_network_forward.1} parent=1 // pred_fallthru
      _
    // Predicated region
    $region6: #{deepened_network_forward.1} parent=1 // pred_check
      _
    $region7: #{deepened_network_forward.1} parent=1 // pred_check_branch
      %21 = sbr.rel (0) target = $region9
    $region8: #{deepened_network_forward.1} parent=1 // pred_region
      _
    $region9: #{deepened_network_forward.1} parent=1 // pred_fallthru
      _
    // Predicated region
    $region10: #{deepened_network_forward.1} parent=1 // pred_check
      _
    $region11: #{deepened_network_forward.1} parent=1 // pred_check_branch
      %23 = sbr.rel (0) target = $region13
    $region12: #{deepened_network_forward.1} parent=1 // pred_region
      _
    $region13: #{deepened_network_forward.1} parent=1 // pred_fallthru
      _
    // Predicated region
    $region14: #{deepened_network_forward.1} parent=1 // pred_check
      _
    $region15: #{deepened_network_forward.1} parent=1 // pred_check_branch
      %25 = sbr.rel (0) target = $region17
    $region16: #{deepened_network_forward.1} parent=1 // pred_region
      _
    $region17: #{deepened_network_forward.1} parent=1 // pred_fallthru
      _
    // Predicated region
    $region18: #{deepened_network_forward.1} parent=1 // pred_check
      _
    $region19: #{deepened_network_forward.1} parent=1 // pred_check_branch
      %27 = sbr.rel (0) target = $region21
    $region20: #{deepened_network_forward.1} parent=1 // pred_region
      _
    $region21: #{deepened_network_forward.1} parent=1 // pred_fallthru
      _
    // Predicated region
    $region22: #{deepened_network_forward.1} parent=1 // pred_check
      _
    $region23: #{deepened_network_forward.1} parent=1 // pred_check_branch
      %29 = sbr.rel (0) target = $region25
    $region24: #{deepened_network_forward.1} parent=1 // pred_region
      _
    $region25: #{deepened_network_forward.1} parent=1 // pred_fallthru
      _
    // Predicated region
    $region26: #{deepened_network_forward.1} parent=1 // pred_check
      _
    $region27: #{deepened_network_forward.1} parent=1 // pred_check_branch
      %31 = sbr.rel (0) target = $region29
    $region28: #{deepened_network_forward.1} parent=1 // pred_region
      _
    $region29: #{deepened_network_forward.1} parent=1 // pred_fallthru
      _
    // Predicated region
    $region30: #{deepened_network_forward.1} parent=1 // pred_check
      _
    $region31: #{deepened_network_forward.1} parent=1 // pred_check_branch
      %33 = sbr.rel (0) target = $region33
    $region32: #{deepened_network_forward.1} parent=1 // pred_region
      _
    $region33: #{deepened_network_forward.1} parent=1 // pred_fallthru
      _
    // Predicated region
    $region34: #{deepened_network_forward.1} parent=1 // pred_check
      _
    $region35: #{deepened_network_forward.1} parent=1 // pred_check_branch
      %35 = sbr.rel (0) target = $region37
    $region36: #{deepened_network_forward.1} parent=1 // pred_region
      _
    $region37: #{deepened_network_forward.1} parent=1 // pred_fallthru
      _
    // Predicated region
    $region38: #{deepened_network_forward.1} parent=1 // pred_check
      _
    $region39: #{deepened_network_forward.1} parent=1 // pred_check_branch
      %37 = sbr.rel (0) target = $region41
    $region40: #{deepened_network_forward.1} parent=1 // pred_region
      _
    $region41: #{deepened_network_forward.1} parent=1 // pred_fallthru
      _
    // Predicated region
    $region42: #{deepened_network_forward.1} parent=1 // pred_check
      _
    $region43: #{deepened_network_forward.1} parent=1 // pred_check_branch
      %39 = sbr.rel (0) target = $region45
    $region44: #{deepened_network_forward.1} parent=1 // pred_region
      _
    $region45: #{deepened_network_forward.1} parent=1 // pred_fallthru
      _
    // Predicated region
    $region46: #{deepened_network_forward.1} parent=1 // pred_check
      _
    $region47: #{deepened_network_forward.1} parent=1 // pred_check_branch
      %41 = sbr.rel (0) target = $region49
    $region48: #{deepened_network_forward.1} parent=1 // pred_region
      _
    $region49: #{deepened_network_forward.1} parent=1 // pred_fallthru
      _
    %v42 = vld [vmem:[%s0] sm:$0xff]
    %v43 = vld [vmem:[%s0 + $0x8] sm:$0xff]
    %v44 = vld [vmem:[%s0 + $0x10] sm:$0xff]
    %v45 = vld [vmem:[%s0 + $0x18] sm:$0xff]
    %46 = vrot.lane.b32.xlu0 %v42, 17
    %v47 = vpop.permute.xlu0 %46
    %48 = vrot.lane.b32.xlu0 %v43, 17
    %v49 = vpop.permute.xlu0 %48
    %50 = vrot.lane.b32.xlu0 %v44, 17
    %v51 = vpop.permute.xlu0 %50
    %52 = vrot.lane.b32.xlu0 %v45, 17
    %v53 = vpop.permute.xlu0 %52
    %v54 = vlaneseq
    %v55 = vand.u32 %v54, 127
    %vm56 = vcmp.lt.s32.totalorder %v55, 17
    %v57 = vsel %vm56, %v51, %v53
    %v58 = vsel %vm56, %v49, %v51
    %v59 = vsel %vm56, %v47, %v49
    %v60 = vsel %vm56, %v53, %v47
    %v61 = vld [vmem:[%s1] sm:$0xf]
    %v63 = vlaneseq
    %v64 = vshrl.u32 %v63, 7
    %v65 = vsub.s32 0, %v64
    %v66 = vrot.slane %v61, %v65
    %v67 = vlaneseq
    %v68 = vshrl.u32 %v67, 7
    %v69 = vsub.s32 1, %v68
    %v70 = vrot.slane %v61, %v69
    %v71 = vlaneseq
    %v72 = vshrl.u32 %v71, 7
    %v73 = vsub.s32 2, %v72
    %v74 = vrot.slane %v61, %v73
    %v75 = vlaneseq
    %v76 = vshrl.u32 %v75, 7
    %v77 = vsub.s32 3, %v76
    %v78 = vrot.slane %v61, %v77
    %v83 = vmul.f32 %v60, %v66
    %v84 = vmul.f32 %v59, %v70
    %v85 = vmul.f32 %v58, %v74
    %v86 = vmul.f32 %v57, %v78
    %87 = vst [vmem:[#allocation2] sm:$0xff] %v83
    %88 = vst [vmem:[#allocation2 + $0x8] sm:$0xff] %v84
    %89 = vst [vmem:[#allocation2 + $0x10] sm:$0xff] %v85
    %90 = vst [vmem:[#allocation2 + $0x18] sm:$0xff] %v86
    %91 = vrot.lane.b32.xlu0 %v42, 16
    %v92 = vpop.permute.xlu0 %91
    %93 = vrot.lane.b32.xlu0 %v43, 16
    %v94 = vpop.permute.xlu0 %93
    %95 = vrot.lane.b32.xlu0 %v44, 16
    %v96 = vpop.permute.xlu0 %95
    %97 = vrot.lane.b32.xlu0 %v45, 16
    %v98 = vpop.permute.xlu0 %97
    %vm99 = vcmp.lt.s32.totalorder %v55, 16
    %v100 = vsel %vm99, %v96, %v98
    %v101 = vsel %vm99, %v94, %v96
    %v102 = vsel %vm99, %v92, %v94
    %v103 = vsel %vm99, %v98, %v92
    %s104 = scalar_lea.vmem %s1, 4
    %v105 = vld [vmem:[%s104] sm:$0xf]
    %v107 = vlaneseq
    %v108 = vshrl.u32 %v107, 7
    %v109 = vsub.s32 0, %v108
    %v110 = vrot.slane %v105, %v109
    %v111 = vlaneseq
    %v112 = vshrl.u32 %v111, 7
    %v113 = vsub.s32 1, %v112
    %v114 = vrot.slane %v105, %v113
    %v115 = vlaneseq
    %v116 = vshrl.u32 %v115, 7
    %v117 = vsub.s32 2, %v116
    %v118 = vrot.slane %v105, %v117
    %v119 = vlaneseq
    %v120 = vshrl.u32 %v119, 7
    %v121 = vsub.s32 3, %v120
    %v122 = vrot.slane %v105, %v121
    %v127 = vmul.f32 %v103, %v110
    %v128 = vmul.f32 %v102, %v114
    %v129 = vmul.f32 %v101, %v118
    %v130 = vmul.f32 %v100, %v122
    %131 = vst [vmem:[#allocation2 + $0x20] sm:$0xff] %v127
    %132 = vst [vmem:[#allocation2 + $0x28] sm:$0xff] %v128
    %133 = vst [vmem:[#allocation2 + $0x30] sm:$0xff] %v129
    %134 = vst [vmem:[#allocation2 + $0x38] sm:$0xff] %v130
    %135 = vrot.lane.b32.xlu0 %v42, 15
    %v136 = vpop.permute.xlu0 %135
    %137 = vrot.lane.b32.xlu0 %v43, 15
    %v138 = vpop.permute.xlu0 %137
    %139 = vrot.lane.b32.xlu0 %v44, 15
    %v140 = vpop.permute.xlu0 %139
    %141 = vrot.lane.b32.xlu0 %v45, 15
    %v142 = vpop.permute.xlu0 %141
    %vm143 = vcmp.lt.s32.totalorder %v55, 15
    %v144 = vsel %vm143, %v140, %v142
    %v145 = vsel %vm143, %v138, %v140
    %v146 = vsel %vm143, %v136, %v138
    %v147 = vsel %vm143, %v142, %v136
    %s148 = scalar_lea.vmem %s1, 8
    %v149 = vld [vmem:[%s148] sm:$0xf]
    %v151 = vlaneseq
    %v152 = vshrl.u32 %v151, 7
    %v153 = vsub.s32 0, %v152
    %v154 = vrot.slane %v149, %v153
    %v155 = vlaneseq
    %v156 = vshrl.u32 %v155, 7
    %v157 = vsub.s32 1, %v156
    %v158 = vrot.slane %v149, %v157
    %v159 = vlaneseq
    %v160 = vshrl.u32 %v159, 7
    %v161 = vsub.s32 2, %v160
    %v162 = vrot.slane %v149, %v161
    %v163 = vlaneseq
    %v164 = vshrl.u32 %v163, 7
    %v165 = vsub.s32 3, %v164
    %v166 = vrot.slane %v149, %v165
    %v171 = vmul.f32 %v147, %v154
    %v172 = vmul.f32 %v146, %v158
    %v173 = vmul.f32 %v145, %v162
    %v174 = vmul.f32 %v144, %v166
    %175 = vst [vmem:[#allocation2 + $0x40] sm:$0xff] %v171
    %176 = vst [vmem:[#allocation2 + $0x48] sm:$0xff] %v172
    %177 = vst [vmem:[#allocation2 + $0x50] sm:$0xff] %v173
    %178 = vst [vmem:[#allocation2 + $0x58] sm:$0xff] %v174
    %179 = vrot.lane.b32.xlu0 %v42, 1
    %v180 = vpop.permute.xlu0 %179
    %181 = vrot.lane.b32.xlu0 %v43, 1
    %v182 = vpop.permute.xlu0 %181
    %183 = vrot.lane.b32.xlu0 %v44, 1
    %v184 = vpop.permute.xlu0 %183
    %185 = vrot.lane.b32.xlu0 %v45, 1
    %v186 = vpop.permute.xlu0 %185
    %vm187 = vcmp.lt.s32.totalorder %v55, 1
    %v188 = vsel %vm187, %v184, %v186
    %v189 = vsel %vm187, %v182, %v184
    %v190 = vsel %vm187, %v180, %v182
    %v191 = vsel %vm187, %v186, %v180
    %s192 = scalar_lea.vmem %s1, 12
    %v193 = vld [vmem:[%s192] sm:$0xf]
    %v195 = vlaneseq
    %v196 = vshrl.u32 %v195, 7
    %v197 = vsub.s32 0, %v196
    %v198 = vrot.slane %v193, %v197
    %v199 = vlaneseq
    %v200 = vshrl.u32 %v199, 7
    %v201 = vsub.s32 1, %v200
    %v202 = vrot.slane %v193, %v201
    %v203 = vlaneseq
    %v204 = vshrl.u32 %v203, 7
    %v205 = vsub.s32 2, %v204
    %v206 = vrot.slane %v193, %v205
    %v207 = vlaneseq
    %v208 = vshrl.u32 %v207, 7
    %v209 = vsub.s32 3, %v208
    %v210 = vrot.slane %v193, %v209
    %v215 = vmul.f32 %v191, %v198
    %v216 = vmul.f32 %v190, %v202
    %v217 = vmul.f32 %v189, %v206
    %v218 = vmul.f32 %v188, %v210
    %219 = vst [vmem:[#allocation2 + $0x60] sm:$0xff] %v215
    %220 = vst [vmem:[#allocation2 + $0x68] sm:$0xff] %v216
    %221 = vst [vmem:[#allocation2 + $0x70] sm:$0xff] %v217
    %222 = vst [vmem:[#allocation2 + $0x78] sm:$0xff] %v218
    %223 = vst [vmem:[#allocation2 + $0x80] sm:$0xff] %v42
    %224 = vst [vmem:[#allocation2 + $0x88] sm:$0xff] %v43
    %225 = vst [vmem:[#allocation2 + $0x90] sm:$0xff] %v44
    %226 = vst [vmem:[#allocation2 + $0x98] sm:$0xff] %v45
    %227 = vrot.lane.b32.xlu0 %v42, 127
    %v228 = vpop.permute.xlu0 %227
    %229 = vrot.lane.b32.xlu0 %v43, 127
    %v230 = vpop.permute.xlu0 %229
    %231 = vrot.lane.b32.xlu0 %v44, 127
    %v232 = vpop.permute.xlu0 %231
    %233 = vrot.lane.b32.xlu0 %v45, 127
    %v234 = vpop.permute.xlu0 %233
    %vm235 = vcmp.lt.s32.totalorder %v55, 127
    %v236 = vsel %vm235, %v232, %v234
    %v237 = vsel %vm235, %v230, %v232
    %v238 = vsel %vm235, %v228, %v230
    %v239 = vsel %vm235, %v234, %v228
    %s240 = scalar_lea.vmem %s1, 20
    %v241 = vld [vmem:[%s240] sm:$0xf]
    %v243 = vlaneseq
    %v244 = vshrl.u32 %v243, 7
    %v245 = vsub.s32 0, %v244
    %v246 = vrot.slane %v241, %v245
    %v247 = vlaneseq
    %v248 = vshrl.u32 %v247, 7
    %v249 = vsub.s32 1, %v248
    %v250 = vrot.slane %v241, %v249
    %v251 = vlaneseq
    %v252 = vshrl.u32 %v251, 7
    %v253 = vsub.s32 2, %v252
    %v254 = vrot.slane %v241, %v253
    %v255 = vlaneseq
    %v256 = vshrl.u32 %v255, 7
    %v257 = vsub.s32 3, %v256
    %v258 = vrot.slane %v241, %v257
    %v263 = vmul.f32 %v238, %v246
    %v264 = vmul.f32 %v237, %v250
    %v265 = vmul.f32 %v236, %v254
    %v266 = vmul.f32 %v239, %v258
    %267 = vst [vmem:[#allocation2 + $0xa0] sm:$0xff] %v263
    %268 = vst [vmem:[#allocation2 + $0xa8] sm:$0xff] %v264
    %269 = vst [vmem:[#allocation2 + $0xb0] sm:$0xff] %v265
    %270 = vst [vmem:[#allocation2 + $0xb8] sm:$0xff] %v266
    %271 = vrot.lane.b32.xlu0 %v42, 113
    %v272 = vpop.permute.xlu0 %271
    %273 = vrot.lane.b32.xlu0 %v43, 113
    %v274 = vpop.permute.xlu0 %273
    %275 = vrot.lane.b32.xlu0 %v44, 113
    %v276 = vpop.permute.xlu0 %275
    %277 = vrot.lane.b32.xlu0 %v45, 113
    %v278 = vpop.permute.xlu0 %277
    %vm279 = vcmp.lt.s32.totalorder %v55, 113
    %v280 = vsel %vm279, %v276, %v278
    %v281 = vsel %vm279, %v274, %v276
    %v282 = vsel %vm279, %v272, %v274
    %v283 = vsel %vm279, %v278, %v272
    %s284 = scalar_lea.vmem %s1, 24
    %v285 = vld [vmem:[%s284] sm:$0xf]
    %v287 = vlaneseq
    %v288 = vshrl.u32 %v287, 7
    %v289 = vsub.s32 0, %v288
    %v290 = vrot.slane %v285, %v289
    %v291 = vlaneseq
    %v292 = vshrl.u32 %v291, 7
    %v293 = vsub.s32 1, %v292
    %v294 = vrot.slane %v285, %v293
    %v295 = vlaneseq
    %v296 = vshrl.u32 %v295, 7
    %v297 = vsub.s32 2, %v296
    %v298 = vrot.slane %v285, %v297
    %v299 = vlaneseq
    %v300 = vshrl.u32 %v299, 7
    %v301 = vsub.s32 3, %v300
    %v302 = vrot.slane %v285, %v301
    %v307 = vmul.f32 %v282, %v290
    %v308 = vmul.f32 %v281, %v294
    %v309 = vmul.f32 %v280, %v298
    %v310 = vmul.f32 %v283, %v302
    %311 = vst [vmem:[#allocation2 + $0xc0] sm:$0xff] %v307
    %312 = vst [vmem:[#allocation2 + $0xc8] sm:$0xff] %v308
    %313 = vst [vmem:[#allocation2 + $0xd0] sm:$0xff] %v309
    %314 = vst [vmem:[#allocation2 + $0xd8] sm:$0xff] %v310
    %315 = vrot.lane.b32.xlu0 %v42, 112
    %v316 = vpop.permute.xlu0 %315
    %317 = vrot.lane.b32.xlu0 %v43, 112
    %v318 = vpop.permute.xlu0 %317
    %319 = vrot.lane.b32.xlu0 %v44, 112
    %v320 = vpop.permute.xlu0 %319
    %321 = vrot.lane.b32.xlu0 %v45, 112
    %v322 = vpop.permute.xlu0 %321
    %vm323 = vcmp.lt.s32.totalorder %v55, 112
    %v324 = vsel %vm323, %v320, %v322
    %v325 = vsel %vm323, %v318, %v320
    %v326 = vsel %vm323, %v316, %v318
    %v327 = vsel %vm323, %v322, %v316
    %s328 = scalar_lea.vmem %s1, 28
    %v329 = vld [vmem:[%s328] sm:$0xf]
    %v331 = vlaneseq
    %v332 = vshrl.u32 %v331, 7
    %v333 = vsub.s32 0, %v332
    %v334 = vrot.slane %v329, %v333
    %v335 = vlaneseq
    %v336 = vshrl.u32 %v335, 7
    %v337 = vsub.s32 1, %v336
    %v338 = vrot.slane %v329, %v337
    %v339 = vlaneseq
    %v340 = vshrl.u32 %v339, 7
    %v341 = vsub.s32 2, %v340
    %v342 = vrot.slane %v329, %v341
    %v343 = vlaneseq
    %v344 = vshrl.u32 %v343, 7
    %v345 = vsub.s32 3, %v344
    %v346 = vrot.slane %v329, %v345
    %v351 = vmul.f32 %v326, %v334
    %v352 = vmul.f32 %v325, %v338
    %v353 = vmul.f32 %v324, %v342
    %v354 = vmul.f32 %v327, %v346
    %355 = vst [vmem:[#allocation2 + $0xe0] sm:$0xff] %v351
    %356 = vst [vmem:[#allocation2 + $0xe8] sm:$0xff] %v352
    %357 = vst [vmem:[#allocation2 + $0xf0] sm:$0xff] %v353
    %358 = vst [vmem:[#allocation2 + $0xf8] sm:$0xff] %v354
    %359 = vrot.lane.b32.xlu0 %v42, 111
    %v360 = vpop.permute.xlu0 %359
    %361 = vrot.lane.b32.xlu0 %v43, 111
    %v362 = vpop.permute.xlu0 %361
    %363 = vrot.lane.b32.xlu0 %v44, 111
    %v364 = vpop.permute.xlu0 %363
    %365 = vrot.lane.b32.xlu0 %v45, 111
    %v366 = vpop.permute.xlu0 %365
    %vm367 = vcmp.lt.s32.totalorder %v55, 111
    %v368 = vsel %vm367, %v364, %v366
    %v369 = vsel %vm367, %v362, %v364
    %v370 = vsel %vm367, %v360, %v362
    %v371 = vsel %vm367, %v366, %v360
    %s372 = scalar_lea.vmem %s1, 32
    %v373 = vld [vmem:[%s372] sm:$0xf]
    %v375 = vlaneseq
    %v376 = vshrl.u32 %v375, 7
    %v377 = vsub.s32 0, %v376
    %v378 = vrot.slane %v373, %v377
    %v379 = vlaneseq
    %v380 = vshrl.u32 %v379, 7
    %v381 = vsub.s32 1, %v380
    %v382 = vrot.slane %v373, %v381
    %v383 = vlaneseq
    %v384 = vshrl.u32 %v383, 7
    %v385 = vsub.s32 2, %v384
    %v386 = vrot.slane %v373, %v385
    %v387 = vlaneseq
    %v388 = vshrl.u32 %v387, 7
    %v389 = vsub.s32 3, %v388
    %v390 = vrot.slane %v373, %v389
    %v395 = vmul.f32 %v370, %v378
    %v396 = vmul.f32 %v369, %v382
    %v397 = vmul.f32 %v368, %v386
    %v398 = vmul.f32 %v371, %v390
    %399 = vst [vmem:[#allocation2 + $0x100] sm:$0xff] %v395
    %400 = vst [vmem:[#allocation2 + $0x108] sm:$0xff] %v396
    %401 = vst [vmem:[#allocation2 + $0x110] sm:$0xff] %v397
    %402 = vst [vmem:[#allocation2 + $0x118] sm:$0xff] %v398
    %v403 = vld [vmem:[#allocation2] sm:$0xff]
    %v404 = vld [vmem:[#allocation2 + $0x8] sm:$0xff]
    %v405 = vld [vmem:[#allocation2 + $0x10] sm:$0xff]
    %v406 = vld [vmem:[#allocation2 + $0x18] sm:$0xff]
    %v407 = vld [vmem:[#allocation2 + $0x20] sm:$0xff]
    %v408 = vld [vmem:[#allocation2 + $0x28] sm:$0xff]
    %v409 = vld [vmem:[#allocation2 + $0x30] sm:$0xff]
    %v410 = vld [vmem:[#allocation2 + $0x38] sm:$0xff]
    %v411 = vld [vmem:[#allocation2 + $0x40] sm:$0xff]
    %v412 = vld [vmem:[#allocation2 + $0x48] sm:$0xff]
    %v413 = vld [vmem:[#allocation2 + $0x50] sm:$0xff]
    %v414 = vld [vmem:[#allocation2 + $0x58] sm:$0xff]
    %v415 = vld [vmem:[#allocation2 + $0x60] sm:$0xff]
    %v416 = vld [vmem:[#allocation2 + $0x68] sm:$0xff]
    %v417 = vld [vmem:[#allocation2 + $0x70] sm:$0xff]
    %v418 = vld [vmem:[#allocation2 + $0x78] sm:$0xff]
    %v419 = vld [vmem:[#allocation2 + $0x80] sm:$0xff]
    %v420 = vld [vmem:[#allocation2 + $0x88] sm:$0xff]
    %v421 = vld [vmem:[#allocation2 + $0x90] sm:$0xff]
    %v422 = vld [vmem:[#allocation2 + $0x98] sm:$0xff]
    %v423 = vld [vmem:[#allocation2 + $0xa0] sm:$0xff]
    %v424 = vld [vmem:[#allocation2 + $0xa8] sm:$0xff]
    %v425 = vld [vmem:[#allocation2 + $0xb0] sm:$0xff]
    %v426 = vld [vmem:[#allocation2 + $0xb8] sm:$0xff]
    %v427 = vld [vmem:[#allocation2 + $0xc0] sm:$0xff]
    %v428 = vld [vmem:[#allocation2 + $0xc8] sm:$0xff]
    %v429 = vld [vmem:[#allocation2 + $0xd0] sm:$0xff]
    %v430 = vld [vmem:[#allocation2 + $0xd8] sm:$0xff]
    %v431 = vld [vmem:[#allocation2 + $0xe0] sm:$0xff]
    %v432 = vld [vmem:[#allocation2 + $0xe8] sm:$0xff]
    %v433 = vld [vmem:[#allocation2 + $0xf0] sm:$0xff]
    %v434 = vld [vmem:[#allocation2 + $0xf8] sm:$0xff]
    %v435 = vld [vmem:[#allocation2 + $0x100] sm:$0xff]
    %v436 = vld [vmem:[#allocation2 + $0x108] sm:$0xff]
    %v437 = vld [vmem:[#allocation2 + $0x110] sm:$0xff]
    %v438 = vld [vmem:[#allocation2 + $0x118] sm:$0xff]
    %v439 = vld [vmem:[%s2] sm:$0xff]
    %v440 = vld [vmem:[%s3] sm:$0xff]
    %442 = vset.pattern.permute.xlu0 0
    %443 = vperm.xlu0 %442, %v440
    %v444 = vpop.permute.xlu0 %443
    %vm446 = vcmask 588800
    %v448 = vsel %vm446, %v439, 0
    %450 = vmatprep.subr.mxu0 %v404
    %451 = vmatpush1.msra.mxu0 %v403
    %452 = vmatprep.subr.mxu0 %v408
    %453 = vmatpush1.msra.mxu0 %v407
    %454 = vmatprep.subr.mxu0 %v412
    %455 = vmatpush1.msra.mxu0 %v411
    %456 = vmatprep.subr.mxu0 %v416
    %457 = vmatpush1.msra.mxu0 %v415
    %458 = vmatprep.subr.mxu0 %v420
    %459 = vmatpush1.msra.mxu0 %v419
    %460 = vmatprep.subr.mxu0 %v424
    %461 = vmatpush1.msra.mxu0 %v423
    %462 = vmatprep.subr.mxu0 %v428
    %463 = vmatpush1.msra.mxu0 %v427
    %464 = vmatprep.subr.mxu0 %v432
    %465 = vmatpush1.msra.mxu0 %v431
    %466 = vmatprep.subr.mxu0 %v436
    %467 = vmatpush1.msra.mxu0 %v435
    %468 = vmatprep.subr.mxu0 0.0
    %469 = vmatpush1.msra.mxu0 0.0
    %470 = vmatprep.subr.mxu0 0.0
    %471 = vmatpush1.msra.mxu0 0.0
    %472 = vmatprep.subr.mxu0 0.0
    %473 = vmatpush1.msra.mxu0 0.0
    %474 = vmatprep.subr.mxu0 0.0
    %475 = vmatpush1.msra.mxu0 0.0
    %476 = vmatprep.subr.mxu0 0.0
    %477 = vmatpush1.msra.mxu0 0.0
    %478 = vmatprep.subr.mxu0 0.0
    %479 = vmatpush1.msra.mxu0 0.0
    %480 = vmatprep.subr.mxu0 0.0
    %481 = vmatpush1.msra.mxu0 0.0
    %482 = vmatprep.subr.mxu0 0.0
    %483 = vmatpush1.msra.mxu0 0.0
    %484 = vmatprep.subr.mxu0 0.0
    %485 = vmatpush1.msra.mxu0 0.0
    %486 = vmatprep.subr.mxu0 0.0
    %487 = vmatpush1.msra.mxu0 0.0
    %488 = vmatprep.subr.mxu0 0.0
    %489 = vmatpush1.msra.mxu0 0.0
    %490 = vmatprep.subr.mxu0 0.0
    %491 = vmatpush1.msra.mxu0 0.0
    %492 = vmatprep.subr.mxu0 0.0
    %493 = vmatpush1.msra.mxu0 0.0
    %494 = vmatprep.subr.mxu0 0.0
    %495 = vmatpush1.msra.mxu0 0.0
    %496 = vmatprep.subr.mxu0 0.0
    %497 = vmatpush1.msra.mxu0 0.0
    %498 = vmatprep.subr.mxu0 0.0
    %499 = vmatpush1.msra.mxu0 0.0
    %500 = vmatprep.subr.mxu0 0.0
    %501 = vmatpush1.msra.mxu0 0.0
    %502 = vmatprep.subr.mxu0 0.0
    %503 = vmatpush1.msra.mxu0 0.0
    %504 = vmatprep.subr.mxu0 0.0
    %505 = vmatpush1.msra.mxu0 0.0
    %506 = vmatprep.subr.mxu0 0.0
    %507 = vmatpush1.msra.mxu0 0.0
    %508 = vmatprep.subr.mxu0 0.0
    %509 = vmatpush1.msra.mxu0 0.0
    %510 = vmatprep.subr.mxu0 0.0
    %511 = vmatpush1.msra.mxu0 0.0
    %512 = vmatprep.subr.mxu0 0.0
    %513 = vmatpush1.msra.mxu0 0.0
    %514 = vmatprep.mubr.f32.mxu0 0.0
    %515 = vmatmul.mubr.f32.gmra.mrb[0].mxu0 %v448
    %v516 = vpop.f32.mrb[0].mxu0
    %v517 = vadd.f32 %v444, %v516
    %v518 = vpop.f32.mrb[0].mxu0
    %v519 = vadd.f32 %v444, %v518
    %520 = vdwg.mxu0
    %521 = vmatprep.subr.mxu0 %v406
    %522 = vmatpush1.msra.mxu0 %v405
    %523 = vmatprep.subr.mxu0 %v410
    %524 = vmatpush1.msra.mxu0 %v409
    %525 = vmatprep.subr.mxu0 %v414
    %526 = vmatpush1.msra.mxu0 %v413
    %527 = vmatprep.subr.mxu0 %v418
    %528 = vmatpush1.msra.mxu0 %v417
    %529 = vmatprep.subr.mxu0 %v422
    %530 = vmatpush1.msra.mxu0 %v421
    %531 = vmatprep.subr.mxu0 %v426
    %532 = vmatpush1.msra.mxu0 %v425
    %533 = vmatprep.subr.mxu0 %v430
    %534 = vmatpush1.msra.mxu0 %v429
    %535 = vmatprep.subr.mxu0 %v434
    %536 = vmatpush1.msra.mxu0 %v433
    %537 = vmatprep.subr.mxu0 %v438
    %538 = vmatpush1.msra.mxu0 %v437
    %539 = vmatprep.subr.mxu0 0.0
    %540 = vmatpush1.msra.mxu0 0.0
    %541 = vmatprep.subr.mxu0 0.0
    %542 = vmatpush1.msra.mxu0 0.0
    %543 = vmatprep.subr.mxu0 0.0
    %544 = vmatpush1.msra.mxu0 0.0
    %545 = vmatprep.subr.mxu0 0.0
    %546 = vmatpush1.msra.mxu0 0.0
    %547 = vmatprep.subr.mxu0 0.0
    %548 = vmatpush1.msra.mxu0 0.0
    %549 = vmatprep.subr.mxu0 0.0
    %550 = vmatpush1.msra.mxu0 0.0
    %551 = vmatprep.subr.mxu0 0.0
    %552 = vmatpush1.msra.mxu0 0.0
    %553 = vmatprep.subr.mxu0 0.0
    %554 = vmatpush1.msra.mxu0 0.0
    %555 = vmatprep.subr.mxu0 0.0
    %556 = vmatpush1.msra.mxu0 0.0
    %557 = vmatprep.subr.mxu0 0.0
    %558 = vmatpush1.msra.mxu0 0.0
    %559 = vmatprep.subr.mxu0 0.0
    %560 = vmatpush1.msra.mxu0 0.0
    %561 = vmatprep.subr.mxu0 0.0
    %562 = vmatpush1.msra.mxu0 0.0
    %563 = vmatprep.subr.mxu0 0.0
    %564 = vmatpush1.msra.mxu0 0.0
    %565 = vmatprep.subr.mxu0 0.0
    %566 = vmatpush1.msra.mxu0 0.0
    %567 = vmatprep.subr.mxu0 0.0
    %568 = vmatpush1.msra.mxu0 0.0
    %569 = vmatprep.subr.mxu0 0.0
    %570 = vmatpush1.msra.mxu0 0.0
    %571 = vmatprep.subr.mxu0 0.0
    %572 = vmatpush1.msra.mxu0 0.0
    %573 = vmatprep.subr.mxu0 0.0
    %574 = vmatpush1.msra.mxu0 0.0
    %575 = vmatprep.subr.mxu0 0.0
    %576 = vmatpush1.msra.mxu0 0.0
    %577 = vmatprep.subr.mxu0 0.0
    %578 = vmatpush1.msra.mxu0 0.0
    %579 = vmatprep.subr.mxu0 0.0
    %580 = vmatpush1.msra.mxu0 0.0
    %581 = vmatprep.subr.mxu0 0.0
    %582 = vmatpush1.msra.mxu0 0.0
    %583 = vmatprep.subr.mxu0 0.0
    %584 = vmatpush1.msra.mxu0 0.0
    %585 = vmatprep.mubr.f32.mxu0 0.0
    %586 = vmatmul.mubr.f32.gmra.mrb[0].mxu0 %v448
    %v587 = vpop.f32.mrb[0].mxu0
    %v588 = vadd.f32 %v444, %v587
    %v589 = vpop.f32.mrb[0].mxu0
    %v590 = vadd.f32 %v444, %v589
    %591 = vdwg.mxu0
    %v592 = vmax.f32 %v517, 0.0
    %v593 = vmax.f32 %v519, 0.0
    %v594 = vmax.f32 %v588, 0.0
    %v595 = vmax.f32 %v590, 0.0
    %596 = vrot.lane.b32.xlu0 %v592, 17
    %v597 = vpop.permute.xlu0 %596
    %598 = vrot.lane.b32.xlu0 %v593, 17
    %v599 = vpop.permute.xlu0 %598
    %600 = vrot.lane.b32.xlu0 %v594, 17
    %v601 = vpop.permute.xlu0 %600
    %602 = vrot.lane.b32.xlu0 %v595, 17
    %v603 = vpop.permute.xlu0 %602
    %v604 = vsel %vm56, %v601, %v603
    %v605 = vsel %vm56, %v599, %v601
    %v606 = vsel %vm56, %v597, %v599
    %v607 = vsel %vm56, %v603, %v597
    %v608 = vld [vmem:[%s1] sm:$0xf]
    %v610 = vlaneseq
    %v611 = vshrl.u32 %v610, 7
    %v612 = vsub.s32 0, %v611
    %v613 = vrot.slane %v608, %v612
    %v614 = vlaneseq
    %v615 = vshrl.u32 %v614, 7
    %v616 = vsub.s32 1, %v615
    %v617 = vrot.slane %v608, %v616
    %v618 = vlaneseq
    %v619 = vshrl.u32 %v618, 7
    %v620 = vsub.s32 2, %v619
    %v621 = vrot.slane %v608, %v620
    %v622 = vlaneseq
    %v623 = vshrl.u32 %v622, 7
    %v624 = vsub.s32 3, %v623
    %v625 = vrot.slane %v608, %v624
    %v630 = vmul.f32 %v607, %v613
    %v631 = vmul.f32 %v606, %v617
    %v632 = vmul.f32 %v605, %v621
    %v633 = vmul.f32 %v604, %v625
    %634 = vst [vmem:[#allocation2] sm:$0xff] %v630
    %635 = vst [vmem:[#allocation2 + $0x8] sm:$0xff] %v631
    %636 = vst [vmem:[#allocation2 + $0x10] sm:$0xff] %v632
    %637 = vst [vmem:[#allocation2 + $0x18] sm:$0xff] %v633
    %638 = vrot.lane.b32.xlu0 %v592, 16
    %v639 = vpop.permute.xlu0 %638
    %640 = vrot.lane.b32.xlu0 %v593, 16
    %v641 = vpop.permute.xlu0 %640
    %642 = vrot.lane.b32.xlu0 %v594, 16
    %v643 = vpop.permute.xlu0 %642
    %644 = vrot.lane.b32.xlu0 %v595, 16
    %v645 = vpop.permute.xlu0 %644
    %v646 = vsel %vm99, %v643, %v645
    %v647 = vsel %vm99, %v641, %v643
    %v648 = vsel %vm99, %v639, %v641
    %v649 = vsel %vm99, %v645, %v639
    %v650 = vld [vmem:[%s104] sm:$0xf]
    %v652 = vlaneseq
    %v653 = vshrl.u32 %v652, 7
    %v654 = vsub.s32 0, %v653
    %v655 = vrot.slane %v650, %v654
    %v656 = vlaneseq
    %v657 = vshrl.u32 %v656, 7
    %v658 = vsub.s32 1, %v657
    %v659 = vrot.slane %v650, %v658
    %v660 = vlaneseq
    %v661 = vshrl.u32 %v660, 7
    %v662 = vsub.s32 2, %v661
    %v663 = vrot.slane %v650, %v662
    %v664 = vlaneseq
    %v665 = vshrl.u32 %v664, 7
    %v666 = vsub.s32 3, %v665
    %v667 = vrot.slane %v650, %v666
    %v672 = vmul.f32 %v649, %v655
    %v673 = vmul.f32 %v648, %v659
    %v674 = vmul.f32 %v647, %v663
    %v675 = vmul.f32 %v646, %v667
    %676 = vst [vmem:[#allocation2 + $0x20] sm:$0xff] %v672
    %677 = vst [vmem:[#allocation2 + $0x28] sm:$0xff] %v673
    %678 = vst [vmem:[#allocation2 + $0x30] sm:$0xff] %v674
    %679 = vst [vmem:[#allocation2 + $0x38] sm:$0xff] %v675
    %680 = vrot.lane.b32.xlu0 %v592, 15
    %v681 = vpop.permute.xlu0 %680
    %682 = vrot.lane.b32.xlu0 %v593, 15
    %v683 = vpop.permute.xlu0 %682
    %684 = vrot.lane.b32.xlu0 %v594, 15
    %v685 = vpop.permute.xlu0 %684
    %686 = vrot.lane.b32.xlu0 %v595, 15
    %v687 = vpop.permute.xlu0 %686
    %v688 = vsel %vm143, %v685, %v687
    %v689 = vsel %vm143, %v683, %v685
    %v690 = vsel %vm143, %v681, %v683
    %v691 = vsel %vm143, %v687, %v681
    %v692 = vld [vmem:[%s148] sm:$0xf]
    %v694 = vlaneseq
    %v695 = vshrl.u32 %v694, 7
    %v696 = vsub.s32 0, %v695
    %v697 = vrot.slane %v692, %v696
    %v698 = vlaneseq
    %v699 = vshrl.u32 %v698, 7
    %v700 = vsub.s32 1, %v699
    %v701 = vrot.slane %v692, %v700
    %v702 = vlaneseq
    %v703 = vshrl.u32 %v702, 7
    %v704 = vsub.s32 2, %v703
    %v705 = vrot.slane %v692, %v704
    %v706 = vlaneseq
    %v707 = vshrl.u32 %v706, 7
    %v708 = vsub.s32 3, %v707
    %v709 = vrot.slane %v692, %v708
    %v714 = vmul.f32 %v691, %v697
    %v715 = vmul.f32 %v690, %v701
    %v716 = vmul.f32 %v689, %v705
    %v717 = vmul.f32 %v688, %v709
    %718 = vst [vmem:[#allocation2 + $0x40] sm:$0xff] %v714
    %719 = vst [vmem:[#allocation2 + $0x48] sm:$0xff] %v715
    %720 = vst [vmem:[#allocation2 + $0x50] sm:$0xff] %v716
    %721 = vst [vmem:[#allocation2 + $0x58] sm:$0xff] %v717
    %722 = vrot.lane.b32.xlu0 %v592, 1
    %v723 = vpop.permute.xlu0 %722
    %724 = vrot.lane.b32.xlu0 %v593, 1
    %v725 = vpop.permute.xlu0 %724
    %726 = vrot.lane.b32.xlu0 %v594, 1
    %v727 = vpop.permute.xlu0 %726
    %728 = vrot.lane.b32.xlu0 %v595, 1
    %v729 = vpop.permute.xlu0 %728
    %v730 = vsel %vm187, %v727, %v729
    %v731 = vsel %vm187, %v725, %v727
    %v732 = vsel %vm187, %v723, %v725
    %v733 = vsel %vm187, %v729, %v723
    %v734 = vld [vmem:[%s192] sm:$0xf]
    %v736 = vlaneseq
    %v737 = vshrl.u32 %v736, 7
    %v738 = vsub.s32 0, %v737
    %v739 = vrot.slane %v734, %v738
    %v740 = vlaneseq
    %v741 = vshrl.u32 %v740, 7
    %v742 = vsub.s32 1, %v741
    %v743 = vrot.slane %v734, %v742
    %v744 = vlaneseq
    %v745 = vshrl.u32 %v744, 7
    %v746 = vsub.s32 2, %v745
    %v747 = vrot.slane %v734, %v746
    %v748 = vlaneseq
    %v749 = vshrl.u32 %v748, 7
    %v750 = vsub.s32 3, %v749
    %v751 = vrot.slane %v734, %v750
    %v756 = vmul.f32 %v733, %v739
    %v757 = vmul.f32 %v732, %v743
    %v758 = vmul.f32 %v731, %v747
    %v759 = vmul.f32 %v730, %v751
    %760 = vst [vmem:[#allocation2 + $0x60] sm:$0xff] %v756
    %761 = vst [vmem:[#allocation2 + $0x68] sm:$0xff] %v757
    %762 = vst [vmem:[#allocation2 + $0x70] sm:$0xff] %v758
    %763 = vst [vmem:[#allocation2 + $0x78] sm:$0xff] %v759
    %764 = vst [vmem:[#allocation2 + $0x80] sm:$0xff] %v592
    %765 = vst [vmem:[#allocation2 + $0x88] sm:$0xff] %v593
    %766 = vst [vmem:[#allocation2 + $0x90] sm:$0xff] %v594
    %767 = vst [vmem:[#allocation2 + $0x98] sm:$0xff] %v595
    %768 = vrot.lane.b32.xlu0 %v592, 127
    %v769 = vpop.permute.xlu0 %768
    %770 = vrot.lane.b32.xlu0 %v593, 127
    %v771 = vpop.permute.xlu0 %770
    %772 = vrot.lane.b32.xlu0 %v594, 127
    %v773 = vpop.permute.xlu0 %772
    %774 = vrot.lane.b32.xlu0 %v595, 127
    %v775 = vpop.permute.xlu0 %774
    %v776 = vsel %vm235, %v773, %v775
    %v777 = vsel %vm235, %v771, %v773
    %v778 = vsel %vm235, %v769, %v771
    %v779 = vsel %vm235, %v775, %v769
    %v780 = vld [vmem:[%s240] sm:$0xf]
    %v782 = vlaneseq
    %v783 = vshrl.u32 %v782, 7
    %v784 = vsub.s32 0, %v783
    %v785 = vrot.slane %v780, %v784
    %v786 = vlaneseq
    %v787 = vshrl.u32 %v786, 7
    %v788 = vsub.s32 1, %v787
    %v789 = vrot.slane %v780, %v788
    %v790 = vlaneseq
    %v791 = vshrl.u32 %v790, 7
    %v792 = vsub.s32 2, %v791
    %v793 = vrot.slane %v780, %v792
    %v794 = vlaneseq
    %v795 = vshrl.u32 %v794, 7
    %v796 = vsub.s32 3, %v795
    %v797 = vrot.slane %v780, %v796
    %v802 = vmul.f32 %v778, %v785
    %v803 = vmul.f32 %v777, %v789
    %v804 = vmul.f32 %v776, %v793
    %v805 = vmul.f32 %v779, %v797
    %806 = vst [vmem:[#allocation2 + $0xa0] sm:$0xff] %v802
    %807 = vst [vmem:[#allocation2 + $0xa8] sm:$0xff] %v803
    %808 = vst [vmem:[#allocation2 + $0xb0] sm:$0xff] %v804
    %809 = vst [vmem:[#allocation2 + $0xb8] sm:$0xff] %v805
    %810 = vrot.lane.b32.xlu0 %v592, 113
    %v811 = vpop.permute.xlu0 %810
    %812 = vrot.lane.b32.xlu0 %v593, 113
    %v813 = vpop.permute.xlu0 %812
    %814 = vrot.lane.b32.xlu0 %v594, 113
    %v815 = vpop.permute.xlu0 %814
    %816 = vrot.lane.b32.xlu0 %v595, 113
    %v817 = vpop.permute.xlu0 %816
    %v818 = vsel %vm279, %v815, %v817
    %v819 = vsel %vm279, %v813, %v815
    %v820 = vsel %vm279, %v811, %v813
    %v821 = vsel %vm279, %v817, %v811
    %v822 = vld [vmem:[%s284] sm:$0xf]
    %v824 = vlaneseq
    %v825 = vshrl.u32 %v824, 7
    %v826 = vsub.s32 0, %v825
    %v827 = vrot.slane %v822, %v826
    %v828 = vlaneseq
    %v829 = vshrl.u32 %v828, 7
    %v830 = vsub.s32 1, %v829
    %v831 = vrot.slane %v822, %v830
    %v832 = vlaneseq
    %v833 = vshrl.u32 %v832, 7
    %v834 = vsub.s32 2, %v833
    %v835 = vrot.slane %v822, %v834
    %v836 = vlaneseq
    %v837 = vshrl.u32 %v836, 7
    %v838 = vsub.s32 3, %v837
    %v839 = vrot.slane %v822, %v838
    %v844 = vmul.f32 %v820, %v827
    %v845 = vmul.f32 %v819, %v831
    %v846 = vmul.f32 %v818, %v835
    %v847 = vmul.f32 %v821, %v839
    %848 = vst [vmem:[#allocation2 + $0xc0] sm:$0xff] %v844
    %849 = vst [vmem:[#allocation2 + $0xc8] sm:$0xff] %v845
    %850 = vst [vmem:[#allocation2 + $0xd0] sm:$0xff] %v846
    %851 = vst [vmem:[#allocation2 + $0xd8] sm:$0xff] %v847
    %852 = vrot.lane.b32.xlu0 %v592, 112
    %v853 = vpop.permute.xlu0 %852
    %854 = vrot.lane.b32.xlu0 %v593, 112
    %v855 = vpop.permute.xlu0 %854
    %856 = vrot.lane.b32.xlu0 %v594, 112
    %v857 = vpop.permute.xlu0 %856
    %858 = vrot.lane.b32.xlu0 %v595, 112
    %v859 = vpop.permute.xlu0 %858
    %v860 = vsel %vm323, %v857, %v859
    %v861 = vsel %vm323, %v855, %v857
    %v862 = vsel %vm323, %v853, %v855
    %v863 = vsel %vm323, %v859, %v853
    %v864 = vld [vmem:[%s328] sm:$0xf]
    %v866 = vlaneseq
    %v867 = vshrl.u32 %v866, 7
    %v868 = vsub.s32 0, %v867
    %v869 = vrot.slane %v864, %v868
    %v870 = vlaneseq
    %v871 = vshrl.u32 %v870, 7
    %v872 = vsub.s32 1, %v871
    %v873 = vrot.slane %v864, %v872
    %v874 = vlaneseq
    %v875 = vshrl.u32 %v874, 7
    %v876 = vsub.s32 2, %v875
    %v877 = vrot.slane %v864, %v876
    %v878 = vlaneseq
    %v879 = vshrl.u32 %v878, 7
    %v880 = vsub.s32 3, %v879
    %v881 = vrot.slane %v864, %v880
    %v886 = vmul.f32 %v862, %v869
    %v887 = vmul.f32 %v861, %v873
    %v888 = vmul.f32 %v860, %v877
    %v889 = vmul.f32 %v863, %v881
    %890 = vst [vmem:[#allocation2 + $0xe0] sm:$0xff] %v886
    %891 = vst [vmem:[#allocation2 + $0xe8] sm:$0xff] %v887
    %892 = vst [vmem:[#allocation2 + $0xf0] sm:$0xff] %v888
    %893 = vst [vmem:[#allocation2 + $0xf8] sm:$0xff] %v889
    %894 = vrot.lane.b32.xlu0 %v592, 111
    %v895 = vpop.permute.xlu0 %894
    %896 = vrot.lane.b32.xlu0 %v593, 111
    %v897 = vpop.permute.xlu0 %896
    %898 = vrot.lane.b32.xlu0 %v594, 111
    %v899 = vpop.permute.xlu0 %898
    %900 = vrot.lane.b32.xlu0 %v595, 111
    %v901 = vpop.permute.xlu0 %900
    %v902 = vsel %vm367, %v899, %v901
    %v903 = vsel %vm367, %v897, %v899
    %v904 = vsel %vm367, %v895, %v897
    %v905 = vsel %vm367, %v901, %v895
    %v906 = vld [vmem:[%s372] sm:$0xf]
    %v908 = vlaneseq
    %v909 = vshrl.u32 %v908, 7
    %v910 = vsub.s32 0, %v909
    %v911 = vrot.slane %v906, %v910
    %v912 = vlaneseq
    %v913 = vshrl.u32 %v912, 7
    %v914 = vsub.s32 1, %v913
    %v915 = vrot.slane %v906, %v914
    %v916 = vlaneseq
    %v917 = vshrl.u32 %v916, 7
    %v918 = vsub.s32 2, %v917
    %v919 = vrot.slane %v906, %v918
    %v920 = vlaneseq
    %v921 = vshrl.u32 %v920, 7
    %v922 = vsub.s32 3, %v921
    %v923 = vrot.slane %v906, %v922
    %v928 = vmul.f32 %v904, %v911
    %v929 = vmul.f32 %v903, %v915
    %v930 = vmul.f32 %v902, %v919
    %v931 = vmul.f32 %v905, %v923
    %932 = vst [vmem:[#allocation2 + $0x100] sm:$0xff] %v928
    %933 = vst [vmem:[#allocation2 + $0x108] sm:$0xff] %v929
    %934 = vst [vmem:[#allocation2 + $0x110] sm:$0xff] %v930
    %935 = vst [vmem:[#allocation2 + $0x118] sm:$0xff] %v931
    %v936 = vld [vmem:[#allocation2] sm:$0xff]
    %v937 = vld [vmem:[#allocation2 + $0x8] sm:$0xff]
    %v938 = vld [vmem:[#allocation2 + $0x10] sm:$0xff]
    %v939 = vld [vmem:[#allocation2 + $0x18] sm:$0xff]
    %v940 = vld [vmem:[#allocation2 + $0x20] sm:$0xff]
    %v941 = vld [vmem:[#allocation2 + $0x28] sm:$0xff]
    %v942 = vld [vmem:[#allocation2 + $0x30] sm:$0xff]
    %v943 = vld [vmem:[#allocation2 + $0x38] sm:$0xff]
    %v944 = vld [vmem:[#allocation2 + $0x40] sm:$0xff]
    %v945 = vld [vmem:[#allocation2 + $0x48] sm:$0xff]
    %v946 = vld [vmem:[#allocation2 + $0x50] sm:$0xff]
    %v947 = vld [vmem:[#allocation2 + $0x58] sm:$0xff]
    %v948 = vld [vmem:[#allocation2 + $0x60] sm:$0xff]
    %v949 = vld [vmem:[#allocation2 + $0x68] sm:$0xff]
    %v950 = vld [vmem:[#allocation2 + $0x70] sm:$0xff]
    %v951 = vld [vmem:[#allocation2 + $0x78] sm:$0xff]
    %v952 = vld [vmem:[#allocation2 + $0x80] sm:$0xff]
    %v953 = vld [vmem:[#allocation2 + $0x88] sm:$0xff]
    %v954 = vld [vmem:[#allocation2 + $0x90] sm:$0xff]
    %v955 = vld [vmem:[#allocation2 + $0x98] sm:$0xff]
    %v956 = vld [vmem:[#allocation2 + $0xa0] sm:$0xff]
    %v957 = vld [vmem:[#allocation2 + $0xa8] sm:$0xff]
    %v958 = vld [vmem:[#allocation2 + $0xb0] sm:$0xff]
    %v959 = vld [vmem:[#allocation2 + $0xb8] sm:$0xff]
    %v960 = vld [vmem:[#allocation2 + $0xc0] sm:$0xff]
    %v961 = vld [vmem:[#allocation2 + $0xc8] sm:$0xff]
    %v962 = vld [vmem:[#allocation2 + $0xd0] sm:$0xff]
    %v963 = vld [vmem:[#allocation2 + $0xd8] sm:$0xff]
    %v964 = vld [vmem:[#allocation2 + $0xe0] sm:$0xff]
    %v965 = vld [vmem:[#allocation2 + $0xe8] sm:$0xff]
    %v966 = vld [vmem:[#allocation2 + $0xf0] sm:$0xff]
    %v967 = vld [vmem:[#allocation2 + $0xf8] sm:$0xff]
    %v968 = vld [vmem:[#allocation2 + $0x100] sm:$0xff]
    %v969 = vld [vmem:[#allocation2 + $0x108] sm:$0xff]
    %v970 = vld [vmem:[#allocation2 + $0x110] sm:$0xff]
    %v971 = vld [vmem:[#allocation2 + $0x118] sm:$0xff]
    %v972 = vld [vmem:[%s4] sm:$0xff]
    %v973 = vld [vmem:[%s5] sm:$0xff]
    %975 = vset.pattern.permute.xlu0 0
    %976 = vperm.xlu0 %975, %v973
    %v977 = vpop.permute.xlu0 %976
    %v980 = vsel %vm446, %v972, 0
    %982 = vmatprep.subr.mxu0 %v937
    %983 = vmatpush1.msra.mxu0 %v936
    %984 = vmatprep.subr.mxu0 %v941
    %985 = vmatpush1.msra.mxu0 %v940
    %986 = vmatprep.subr.mxu0 %v945
    %987 = vmatpush1.msra.mxu0 %v944
    %988 = vmatprep.subr.mxu0 %v949
    %989 = vmatpush1.msra.mxu0 %v948
    %990 = vmatprep.subr.mxu0 %v953
    %991 = vmatpush1.msra.mxu0 %v952
    %992 = vmatprep.subr.mxu0 %v957
    %993 = vmatpush1.msra.mxu0 %v956
    %994 = vmatprep.subr.mxu0 %v961
    %995 = vmatpush1.msra.mxu0 %v960
    %996 = vmatprep.subr.mxu0 %v965
    %997 = vmatpush1.msra.mxu0 %v964
    %998 = vmatprep.subr.mxu0 %v969
    %999 = vmatpush1.msra.mxu0 %v968
    %1000 = vmatprep.subr.mxu0 0.0
    %1001 = vmatpush1.msra.mxu0 0.0
    %1002 = vmatprep.subr.mxu0 0.0
    %1003 = vmatpush1.msra.mxu0 0.0
    %1004 = vmatprep.subr.mxu0 0.0
    %1005 = vmatpush1.msra.mxu0 0.0
    %1006 = vmatprep.subr.mxu0 0.0
    %1007 = vmatpush1.msra.mxu0 0.0
    %1008 = vmatprep.subr.mxu0 0.0
    %1009 = vmatpush1.msra.mxu0 0.0
    %1010 = vmatprep.subr.mxu0 0.0
    %1011 = vmatpush1.msra.mxu0 0.0
    %1012 = vmatprep.subr.mxu0 0.0
    %1013 = vmatpush1.msra.mxu0 0.0
    %1014 = vmatprep.subr.mxu0 0.0
    %1015 = vmatpush1.msra.mxu0 0.0
    %1016 = vmatprep.subr.mxu0 0.0
    %1017 = vmatpush1.msra.mxu0 0.0
    %1018 = vmatprep.subr.mxu0 0.0
    %1019 = vmatpush1.msra.mxu0 0.0
    %1020 = vmatprep.subr.mxu0 0.0
    %1021 = vmatpush1.msra.mxu0 0.0
    %1022 = vmatprep.subr.mxu0 0.0
    %1023 = vmatpush1.msra.mxu0 0.0
    %1024 = vmatprep.subr.mxu0 0.0
    %1025 = vmatpush1.msra.mxu0 0.0
    %1026 = vmatprep.subr.mxu0 0.0
    %1027 = vmatpush1.msra.mxu0 0.0
    %1028 = vmatprep.subr.mxu0 0.0
    %1029 = vmatpush1.msra.mxu0 0.0
    %1030 = vmatprep.subr.mxu0 0.0
    %1031 = vmatpush1.msra.mxu0 0.0
    %1032 = vmatprep.subr.mxu0 0.0
    %1033 = vmatpush1.msra.mxu0 0.0
    %1034 = vmatprep.subr.mxu0 0.0
    %1035 = vmatpush1.msra.mxu0 0.0
    %1036 = vmatprep.subr.mxu0 0.0
    %1037 = vmatpush1.msra.mxu0 0.0
    %1038 = vmatprep.subr.mxu0 0.0
    %1039 = vmatpush1.msra.mxu0 0.0
    %1040 = vmatprep.subr.mxu0 0.0
    %1041 = vmatpush1.msra.mxu0 0.0
    %1042 = vmatprep.subr.mxu0 0.0
    %1043 = vmatpush1.msra.mxu0 0.0
    %1044 = vmatprep.subr.mxu0 0.0
    %1045 = vmatpush1.msra.mxu0 0.0
    %1046 = vmatprep.mubr.f32.mxu0 0.0
    %1047 = vmatmul.mubr.f32.gmra.mrb[0].mxu0 %v980
    %v1048 = vpop.f32.mrb[0].mxu0
    %v1049 = vadd.f32 %v977, %v1048
    %v1050 = vpop.f32.mrb[0].mxu0
    %v1051 = vadd.f32 %v977, %v1050
    %1052 = vdwg.mxu0
    %1053 = vmatprep.subr.mxu0 %v939
    %1054 = vmatpush1.msra.mxu0 %v938
    %1055 = vmatprep.subr.mxu0 %v943
    %1056 = vmatpush1.msra.mxu0 %v942
    %1057 = vmatprep.subr.mxu0 %v947
    %1058 = vmatpush1.msra.mxu0 %v946
    %1059 = vmatprep.subr.mxu0 %v951
    %1060 = vmatpush1.msra.mxu0 %v950
    %1061 = vmatprep.subr.mxu0 %v955
    %1062 = vmatpush1.msra.mxu0 %v954
    %1063 = vmatprep.subr.mxu0 %v959
    %1064 = vmatpush1.msra.mxu0 %v958
    %1065 = vmatprep.subr.mxu0 %v963
    %1066 = vmatpush1.msra.mxu0 %v962
    %1067 = vmatprep.subr.mxu0 %v967
    %1068 = vmatpush1.msra.mxu0 %v966
    %1069 = vmatprep.subr.mxu0 %v971
    %1070 = vmatpush1.msra.mxu0 %v970
    %1071 = vmatprep.subr.mxu0 0.0
    %1072 = vmatpush1.msra.mxu0 0.0
    %1073 = vmatprep.subr.mxu0 0.0
    %1074 = vmatpush1.msra.mxu0 0.0
    %1075 = vmatprep.subr.mxu0 0.0
    %1076 = vmatpush1.msra.mxu0 0.0
    %1077 = vmatprep.subr.mxu0 0.0
    %1078 = vmatpush1.msra.mxu0 0.0
    %1079 = vmatprep.subr.mxu0 0.0
    %1080 = vmatpush1.msra.mxu0 0.0
    %1081 = vmatprep.subr.mxu0 0.0
    %1082 = vmatpush1.msra.mxu0 0.0
    %1083 = vmatprep.subr.mxu0 0.0
    %1084 = vmatpush1.msra.mxu0 0.0
    %1085 = vmatprep.subr.mxu0 0.0
    %1086 = vmatpush1.msra.mxu0 0.0
    %1087 = vmatprep.subr.mxu0 0.0
    %1088 = vmatpush1.msra.mxu0 0.0
    %1089 = vmatprep.subr.mxu0 0.0
    %1090 = vmatpush1.msra.mxu0 0.0
    %1091 = vmatprep.subr.mxu0 0.0
    %1092 = vmatpush1.msra.mxu0 0.0
    %1093 = vmatprep.subr.mxu0 0.0
    %1094 = vmatpush1.msra.mxu0 0.0
    %1095 = vmatprep.subr.mxu0 0.0
    %1096 = vmatpush1.msra.mxu0 0.0
    %1097 = vmatprep.subr.mxu0 0.0
    %1098 = vmatpush1.msra.mxu0 0.0
    %1099 = vmatprep.subr.mxu0 0.0
    %1100 = vmatpush1.msra.mxu0 0.0
    %1101 = vmatprep.subr.mxu0 0.0
    %1102 = vmatpush1.msra.mxu0 0.0
    %1103 = vmatprep.subr.mxu0 0.0
    %1104 = vmatpush1.msra.mxu0 0.0
    %1105 = vmatprep.subr.mxu0 0.0
    %1106 = vmatpush1.msra.mxu0 0.0
    %1107 = vmatprep.subr.mxu0 0.0
    %1108 = vmatpush1.msra.mxu0 0.0
    %1109 = vmatprep.subr.mxu0 0.0
    %1110 = vmatpush1.msra.mxu0 0.0
    %1111 = vmatprep.subr.mxu0 0.0
    %1112 = vmatpush1.msra.mxu0 0.0
    %1113 = vmatprep.subr.mxu0 0.0
    %1114 = vmatpush1.msra.mxu0 0.0
    %1115 = vmatprep.subr.mxu0 0.0
    %1116 = vmatpush1.msra.mxu0 0.0
    %1117 = vmatprep.mubr.f32.mxu0 0.0
    %1118 = vmatmul.mubr.f32.gmra.mrb[0].mxu0 %v980
    %v1119 = vpop.f32.mrb[0].mxu0
    %v1120 = vadd.f32 %v977, %v1119
    %v1121 = vpop.f32.mrb[0].mxu0
    %v1122 = vadd.f32 %v977, %v1121
    %1123 = vdwg.mxu0
    %v1124 = vmax.f32 %v1049, 0.0
    %v1125 = vmax.f32 %v1051, 0.0
    %v1126 = vmax.f32 %v1120, 0.0
    %v1127 = vmax.f32 %v1122, 0.0
    %v1130 = vcombine.low %v1124, %v1125
    %v1132 = vunpack.c.l.s4 1966171168
    %v1133 = vunpack.c.0.s8 %v1132
    %v1134 = vlaneseq
    %v1135 = vshrl.u32 %v1134, 7
    %v1136 = vsub.s32 %v1133, %v1135
    %v1137 = vrot.slane %v1130, %v1136
    %v1139 = vunpack.c.l.s4 1966171168
    %v1140 = vunpack.c.0.s8 %v1139
    %v1141 = vlaneseq
    %v1142 = vshrl.u32 %v1141, 7
    %v1143 = vsub.s32 %v1140, %v1142
    %v1144 = vrot.slane %v1137, %v1143
    %v1146 = vlaneseq
    %vm1147 = vcmp.ge.s32.totalorder %v1146, 0
    %vm1148 = vcmp.lt.s32.totalorder %v1146, 256
    %vm1149 = vmand %vm1147, %vm1148
    %1150 = vst.msk [vmem:[#allocation3] ss:$2 sm:$0x3] %vm1149, %v1144
    %v1151 = vcombine.high %v1137, %v1137
    %v1153 = vunpack.c.l.s4 1966171168
    %v1154 = vunpack.c.0.s8 %v1153
    %v1155 = vlaneseq
    %v1156 = vshrl.u32 %v1155, 7
    %v1157 = vsub.s32 %v1154, %v1156
    %v1158 = vrot.slane %v1151, %v1157
    %s1160 = scalar_lea.vmem [#allocation3], 4
    %1161 = vst.msk [vmem:[%s1160] ss:$2 sm:$0x3] %vm1149, %v1158
    %v1162 = vcombine.high %v1144, %v1144
    %s1164 = scalar_lea.vmem [#allocation3], 8
    %1165 = vst.msk [vmem:[%s1164] ss:$2 sm:$0x3] %vm1149, %v1162
    %v1166 = vcombine.high %v1158, %v1158
    %s1168 = scalar_lea.vmem [#allocation3], 12
    %1169 = vst.msk [vmem:[%s1168] ss:$2 sm:$0x3] %vm1149, %v1166
    %v1170 = vcombine.high %v1124, %v1125
    %v1172 = vunpack.c.l.s4 1966171168
    %v1173 = vunpack.c.0.s8 %v1172
    %v1174 = vlaneseq
    %v1175 = vshrl.u32 %v1174, 7
    %v1176 = vsub.s32 %v1173, %v1175
    %v1177 = vrot.slane %v1170, %v1176
    %v1179 = vunpack.c.l.s4 1966171168
    %v1180 = vunpack.c.0.s8 %v1179
    %v1181 = vlaneseq
    %v1182 = vshrl.u32 %v1181, 7
    %v1183 = vsub.s32 %v1180, %v1182
    %v1184 = vrot.slane %v1177, %v1183
    %s1186 = scalar_lea.vmem [#allocation3], 16
    %1187 = vst.msk [vmem:[%s1186] ss:$2 sm:$0x3] %vm1149, %v1184
    %v1188 = vcombine.high %v1177, %v1177
    %v1190 = vunpack.c.l.s4 1966171168
    %v1191 = vunpack.c.0.s8 %v1190
    %v1192 = vlaneseq
    %v1193 = vshrl.u32 %v1192, 7
    %v1194 = vsub.s32 %v1191, %v1193
    %v1195 = vrot.slane %v1188, %v1194
    %s1197 = scalar_lea.vmem [#allocation3], 20
    %1198 = vst.msk [vmem:[%s1197] ss:$2 sm:$0x3] %vm1149, %v1195
    %v1199 = vcombine.high %v1184, %v1184
    %s1201 = scalar_lea.vmem [#allocation3], 24
    %1202 = vst.msk [vmem:[%s1201] ss:$2 sm:$0x3] %vm1149, %v1199
    %v1203 = vcombine.high %v1195, %v1195
    %s1205 = scalar_lea.vmem [#allocation3], 28
    %1206 = vst.msk [vmem:[%s1205] ss:$2 sm:$0x3] %vm1149, %v1203
    %v1209 = vcombine.low %v1126, %v1127
    %v1211 = vunpack.c.l.s4 1966171168
    %v1212 = vunpack.c.0.s8 %v1211
    %v1213 = vlaneseq
    %v1214 = vshrl.u32 %v1213, 7
    %v1215 = vsub.s32 %v1212, %v1214
    %v1216 = vrot.slane %v1209, %v1215
    %v1218 = vunpack.c.l.s4 1966171168
    %v1219 = vunpack.c.0.s8 %v1218
    %v1220 = vlaneseq
    %v1221 = vshrl.u32 %v1220, 7
    %v1222 = vsub.s32 %v1219, %v1221
    %v1223 = vrot.slane %v1216, %v1222
    %s1225 = scalar_lea.vmem [#allocation3], 1
    %1226 = vst.msk [vmem:[%s1225] ss:$2 sm:$0x3] %vm1149, %v1223
    %v1227 = vcombine.high %v1216, %v1216
    %v1229 = vunpack.c.l.s4 1966171168
    %v1230 = vunpack.c.0.s8 %v1229
    %v1231 = vlaneseq
    %v1232 = vshrl.u32 %v1231, 7
    %v1233 = vsub.s32 %v1230, %v1232
    %v1234 = vrot.slane %v1227, %v1233
    %s1236 = scalar_lea.vmem [#allocation3], 5
    %1237 = vst.msk [vmem:[%s1236] ss:$2 sm:$0x3] %vm1149, %v1234
    %v1238 = vcombine.high %v1223, %v1223
    %s1240 = scalar_lea.vmem [#allocation3], 9
    %1241 = vst.msk [vmem:[%s1240] ss:$2 sm:$0x3] %vm1149, %v1238
    %v1242 = vcombine.high %v1234, %v1234
    %s1244 = scalar_lea.vmem [#allocation3], 13
    %1245 = vst.msk [vmem:[%s1244] ss:$2 sm:$0x3] %vm1149, %v1242
    %v1246 = vcombine.high %v1126, %v1127
    %v1248 = vunpack.c.l.s4 1966171168
    %v1249 = vunpack.c.0.s8 %v1248
    %v1250 = vlaneseq
    %v1251 = vshrl.u32 %v1250, 7
    %v1252 = vsub.s32 %v1249, %v1251
    %v1253 = vrot.slane %v1246, %v1252
    %v1255 = vunpack.c.l.s4 1966171168
    %v1256 = vunpack.c.0.s8 %v1255
    %v1257 = vlaneseq
    %v1258 = vshrl.u32 %v1257, 7
    %v1259 = vsub.s32 %v1256, %v1258
    %v1260 = vrot.slane %v1253, %v1259
    %s1262 = scalar_lea.vmem [#allocation3], 17
    %1263 = vst.msk [vmem:[%s1262] ss:$2 sm:$0x3] %vm1149, %v1260
    %v1264 = vcombine.high %v1253, %v1253
    %v1266 = vunpack.c.l.s4 1966171168
    %v1267 = vunpack.c.0.s8 %v1266
    %v1268 = vlaneseq
    %v1269 = vshrl.u32 %v1268, 7
    %v1270 = vsub.s32 %v1267, %v1269
    %v1271 = vrot.slane %v1264, %v1270
    %s1273 = scalar_lea.vmem [#allocation3], 21
    %1274 = vst.msk [vmem:[%s1273] ss:$2 sm:$0x3] %vm1149, %v1271
    %v1275 = vcombine.high %v1260, %v1260
    %s1277 = scalar_lea.vmem [#allocation3], 25
    %1278 = vst.msk [vmem:[%s1277] ss:$2 sm:$0x3] %vm1149, %v1275
    %v1279 = vcombine.high %v1271, %v1271
    %s1281 = scalar_lea.vmem [#allocation3], 29
    %1282 = vst.msk [vmem:[%s1281] ss:$2 sm:$0x3] %vm1149, %v1279
    %v1283 = vld [vmem:[#allocation3] sm:$0xff]
    %v1284 = vld [vmem:[#allocation3 + $0x8] sm:$0xff]
    %v1285 = vld [vmem:[#allocation3 + $0x10] sm:$0xff]
    %v1286 = vld [vmem:[#allocation3 + $0x18] sm:$0xff]
    %v1287 = vld [vmem:[%s6] sm:$0xff]
    %v1288 = vld [vmem:[%s6 + $0x8] sm:$0xff]
    %v1289 = vld [vmem:[%s6 + $0x10] sm:$0xff]
    %v1290 = vld [vmem:[%s6 + $0x18] sm:$0xff]
    %v1291 = vld [vmem:[%s6 + $0x20] sm:$0xff]
    %v1292 = vld [vmem:[%s6 + $0x28] sm:$0xff]
    %v1293 = vld [vmem:[%s6 + $0x30] sm:$0xff]
    %v1294 = vld [vmem:[%s6 + $0x38] sm:$0xff]
    %v1295 = vld [vmem:[%s6 + $0x40] sm:$0xff]
    %v1296 = vld [vmem:[%s6 + $0x48] sm:$0xff]
    %v1297 = vld [vmem:[%s6 + $0x50] sm:$0xff]
    %v1298 = vld [vmem:[%s6 + $0x58] sm:$0xff]
    %v1299 = vld [vmem:[%s6 + $0x60] sm:$0xff]
    %v1300 = vld [vmem:[%s6 + $0x68] sm:$0xff]
    %v1301 = vld [vmem:[%s6 + $0x70] sm:$0xff]
    %v1302 = vld [vmem:[%s6 + $0x78] sm:$0xff]
    %v1303 = vld [vmem:[%s6 + $0x80] sm:$0xff]
    %v1304 = vld [vmem:[%s6 + $0x88] sm:$0xff]
    %v1305 = vld [vmem:[%s6 + $0x90] sm:$0xff]
    %v1306 = vld [vmem:[%s6 + $0x98] sm:$0xff]
    %v1307 = vld [vmem:[%s6 + $0xa0] sm:$0xff]
    %v1308 = vld [vmem:[%s6 + $0xa8] sm:$0xff]
    %v1309 = vld [vmem:[%s6 + $0xb0] sm:$0xff]
    %v1310 = vld [vmem:[%s6 + $0xb8] sm:$0xff]
    %v1311 = vld [vmem:[%s6 + $0xc0] sm:$0xff]
    %v1312 = vld [vmem:[%s6 + $0xc8] sm:$0xff]
    %v1313 = vld [vmem:[%s6 + $0xd0] sm:$0xff]
    %v1314 = vld [vmem:[%s6 + $0xd8] sm:$0xff]
    %v1315 = vld [vmem:[%s6 + $0xe0] sm:$0xff]
    %v1316 = vld [vmem:[%s6 + $0xe8] sm:$0xff]
    %v1317 = vld [vmem:[%s6 + $0xf0] sm:$0xff]
    %v1318 = vld [vmem:[%s6 + $0xf8] sm:$0xff]
    %v1319 = vld [vmem:[%s6 + $0x100] sm:$0xff]
    %v1320 = vld [vmem:[%s6 + $0x108] sm:$0xff]
    %v1321 = vld [vmem:[%s6 + $0x110] sm:$0xff]
    %v1322 = vld [vmem:[%s6 + $0x118] sm:$0xff]
    %v1323 = vld [vmem:[%s6 + $0x120] sm:$0xff]
    %v1324 = vld [vmem:[%s6 + $0x128] sm:$0xff]
    %v1325 = vld [vmem:[%s6 + $0x130] sm:$0xff]
    %v1326 = vld [vmem:[%s6 + $0x138] sm:$0xff]
    %v1327 = vld [vmem:[%s6 + $0x140] sm:$0xff]
    %v1328 = vld [vmem:[%s6 + $0x148] sm:$0xff]
    %v1329 = vld [vmem:[%s6 + $0x150] sm:$0xff]
    %v1330 = vld [vmem:[%s6 + $0x158] sm:$0xff]
    %v1331 = vld [vmem:[%s6 + $0x160] sm:$0xff]
    %v1332 = vld [vmem:[%s6 + $0x168] sm:$0xff]
    %v1333 = vld [vmem:[%s6 + $0x170] sm:$0xff]
    %v1334 = vld [vmem:[%s6 + $0x178] sm:$0xff]
    %v1335 = vld [vmem:[%s6 + $0x180] sm:$0xff]
    %v1336 = vld [vmem:[%s6 + $0x188] sm:$0xff]
    %v1337 = vld [vmem:[%s6 + $0x190] sm:$0xff]
    %v1338 = vld [vmem:[%s6 + $0x198] sm:$0xff]
    %v1339 = vld [vmem:[%s6 + $0x1a0] sm:$0xff]
    %v1340 = vld [vmem:[%s6 + $0x1a8] sm:$0xff]
    %v1341 = vld [vmem:[%s6 + $0x1b0] sm:$0xff]
    %v1342 = vld [vmem:[%s6 + $0x1b8] sm:$0xff]
    %v1343 = vld [vmem:[%s6 + $0x1c0] sm:$0xff]
    %v1344 = vld [vmem:[%s6 + $0x1c8] sm:$0xff]
    %v1345 = vld [vmem:[%s6 + $0x1d0] sm:$0xff]
    %v1346 = vld [vmem:[%s6 + $0x1d8] sm:$0xff]
    %v1347 = vld [vmem:[%s6 + $0x1e0] sm:$0xff]
    %v1348 = vld [vmem:[%s6 + $0x1e8] sm:$0xff]
    %v1349 = vld [vmem:[%s6 + $0x1f0] sm:$0xff]
    %v1350 = vld [vmem:[%s6 + $0x1f8] sm:$0xff]
    %v1351 = vld [vmem:[%s6 + $0x200] sm:$0xff]
    %v1352 = vld [vmem:[%s6 + $0x208] sm:$0xff]
    %v1353 = vld [vmem:[%s6 + $0x210] sm:$0xff]
    %v1354 = vld [vmem:[%s6 + $0x218] sm:$0xff]
    %v1355 = vld [vmem:[%s6 + $0x220] sm:$0xff]
    %v1356 = vld [vmem:[%s6 + $0x228] sm:$0xff]
    %v1357 = vld [vmem:[%s6 + $0x230] sm:$0xff]
    %v1358 = vld [vmem:[%s6 + $0x238] sm:$0xff]
    %v1359 = vld [vmem:[%s6 + $0x240] sm:$0xff]
    %v1360 = vld [vmem:[%s6 + $0x248] sm:$0xff]
    %v1361 = vld [vmem:[%s6 + $0x250] sm:$0xff]
    %v1362 = vld [vmem:[%s6 + $0x258] sm:$0xff]
    %v1363 = vld [vmem:[%s6 + $0x260] sm:$0xff]
    %v1364 = vld [vmem:[%s6 + $0x268] sm:$0xff]
    %v1365 = vld [vmem:[%s6 + $0x270] sm:$0xff]
    %v1366 = vld [vmem:[%s6 + $0x278] sm:$0xff]
    %v1367 = vld [vmem:[%s6 + $0x280] sm:$0xff]
    %v1368 = vld [vmem:[%s6 + $0x288] sm:$0xff]
    %v1369 = vld [vmem:[%s6 + $0x290] sm:$0xff]
    %v1370 = vld [vmem:[%s6 + $0x298] sm:$0xff]
    %v1371 = vld [vmem:[%s6 + $0x2a0] sm:$0xff]
    %v1372 = vld [vmem:[%s6 + $0x2a8] sm:$0xff]
    %v1373 = vld [vmem:[%s6 + $0x2b0] sm:$0xff]
    %v1374 = vld [vmem:[%s6 + $0x2b8] sm:$0xff]
    %v1375 = vld [vmem:[%s6 + $0x2c0] sm:$0xff]
    %v1376 = vld [vmem:[%s6 + $0x2c8] sm:$0xff]
    %v1377 = vld [vmem:[%s6 + $0x2d0] sm:$0xff]
    %v1378 = vld [vmem:[%s6 + $0x2d8] sm:$0xff]
    %v1379 = vld [vmem:[%s6 + $0x2e0] sm:$0xff]
    %v1380 = vld [vmem:[%s6 + $0x2e8] sm:$0xff]
    %v1381 = vld [vmem:[%s6 + $0x2f0] sm:$0xff]
    %v1382 = vld [vmem:[%s6 + $0x2f8] sm:$0xff]
    %v1383 = vld [vmem:[%s6 + $0x300] sm:$0xff]
    %v1384 = vld [vmem:[%s6 + $0x308] sm:$0xff]
    %v1385 = vld [vmem:[%s6 + $0x310] sm:$0xff]
    %v1386 = vld [vmem:[%s6 + $0x318] sm:$0xff]
    %v1387 = vld [vmem:[%s6 + $0x320] sm:$0xff]
    %v1388 = vld [vmem:[%s6 + $0x328] sm:$0xff]
    %v1389 = vld [vmem:[%s6 + $0x330] sm:$0xff]
    %v1390 = vld [vmem:[%s6 + $0x338] sm:$0xff]
    %v1391 = vld [vmem:[%s6 + $0x340] sm:$0xff]
    %v1392 = vld [vmem:[%s6 + $0x348] sm:$0xff]
    %v1393 = vld [vmem:[%s6 + $0x350] sm:$0xff]
    %v1394 = vld [vmem:[%s6 + $0x358] sm:$0xff]
    %v1395 = vld [vmem:[%s6 + $0x360] sm:$0xff]
    %v1396 = vld [vmem:[%s6 + $0x368] sm:$0xff]
    %v1397 = vld [vmem:[%s6 + $0x370] sm:$0xff]
    %v1398 = vld [vmem:[%s6 + $0x378] sm:$0xff]
    %v1399 = vld [vmem:[%s6 + $0x380] sm:$0xff]
    %v1400 = vld [vmem:[%s6 + $0x388] sm:$0xff]
    %v1401 = vld [vmem:[%s6 + $0x390] sm:$0xff]
    %v1402 = vld [vmem:[%s6 + $0x398] sm:$0xff]
    %v1403 = vld [vmem:[%s6 + $0x3a0] sm:$0xff]
    %v1404 = vld [vmem:[%s6 + $0x3a8] sm:$0xff]
    %v1405 = vld [vmem:[%s6 + $0x3b0] sm:$0xff]
    %v1406 = vld [vmem:[%s6 + $0x3b8] sm:$0xff]
    %v1407 = vld [vmem:[%s6 + $0x3c0] sm:$0xff]
    %v1408 = vld [vmem:[%s6 + $0x3c8] sm:$0xff]
    %v1409 = vld [vmem:[%s6 + $0x3d0] sm:$0xff]
    %v1410 = vld [vmem:[%s6 + $0x3d8] sm:$0xff]
    %v1411 = vld [vmem:[%s6 + $0x3e0] sm:$0xff]
    %v1412 = vld [vmem:[%s6 + $0x3e8] sm:$0xff]
    %v1413 = vld [vmem:[%s6 + $0x3f0] sm:$0xff]
    %v1414 = vld [vmem:[%s6 + $0x3f8] sm:$0xff]
    %v1415 = vld [vmem:[%s6 + $0x400] sm:$0xff]
    %v1416 = vld [vmem:[%s6 + $0x408] sm:$0xff]
    %v1417 = vld [vmem:[%s6 + $0x410] sm:$0xff]
    %v1418 = vld [vmem:[%s6 + $0x418] sm:$0xff]
    %v1419 = vld [vmem:[%s6 + $0x420] sm:$0xff]
    %v1420 = vld [vmem:[%s6 + $0x428] sm:$0xff]
    %v1421 = vld [vmem:[%s6 + $0x430] sm:$0xff]
    %v1422 = vld [vmem:[%s6 + $0x438] sm:$0xff]
    %v1423 = vld [vmem:[%s6 + $0x440] sm:$0xff]
    %v1424 = vld [vmem:[%s6 + $0x448] sm:$0xff]
    %v1425 = vld [vmem:[%s6 + $0x450] sm:$0xff]
    %v1426 = vld [vmem:[%s6 + $0x458] sm:$0xff]
    %v1427 = vld [vmem:[%s6 + $0x460] sm:$0xff]
    %v1428 = vld [vmem:[%s6 + $0x468] sm:$0xff]
    %v1429 = vld [vmem:[%s6 + $0x470] sm:$0xff]
    %v1430 = vld [vmem:[%s6 + $0x478] sm:$0xff]
    %v1431 = vld [vmem:[%s6 + $0x480] sm:$0xff]
    %v1432 = vld [vmem:[%s6 + $0x488] sm:$0xff]
    %v1433 = vld [vmem:[%s6 + $0x490] sm:$0xff]
    %v1434 = vld [vmem:[%s6 + $0x498] sm:$0xff]
    %v1435 = vld [vmem:[%s6 + $0x4a0] sm:$0xff]
    %v1436 = vld [vmem:[%s6 + $0x4a8] sm:$0xff]
    %v1437 = vld [vmem:[%s6 + $0x4b0] sm:$0xff]
    %v1438 = vld [vmem:[%s6 + $0x4b8] sm:$0xff]
    %v1439 = vld [vmem:[%s6 + $0x4c0] sm:$0xff]
    %v1440 = vld [vmem:[%s6 + $0x4c8] sm:$0xff]
    %v1441 = vld [vmem:[%s6 + $0x4d0] sm:$0xff]
    %v1442 = vld [vmem:[%s6 + $0x4d8] sm:$0xff]
    %v1443 = vld [vmem:[%s6 + $0x4e0] sm:$0xff]
    %v1444 = vld [vmem:[%s6 + $0x4e8] sm:$0xff]
    %v1445 = vld [vmem:[%s6 + $0x4f0] sm:$0xff]
    %v1446 = vld [vmem:[%s6 + $0x4f8] sm:$0xff]
    %v1447 = vld [vmem:[%s6 + $0x500] sm:$0xff]
    %v1448 = vld [vmem:[%s6 + $0x508] sm:$0xff]
    %v1449 = vld [vmem:[%s6 + $0x510] sm:$0xff]
    %v1450 = vld [vmem:[%s6 + $0x518] sm:$0xff]
    %v1451 = vld [vmem:[%s6 + $0x520] sm:$0xff]
    %v1452 = vld [vmem:[%s6 + $0x528] sm:$0xff]
    %v1453 = vld [vmem:[%s6 + $0x530] sm:$0xff]
    %v1454 = vld [vmem:[%s6 + $0x538] sm:$0xff]
    %v1455 = vld [vmem:[%s6 + $0x540] sm:$0xff]
    %v1456 = vld [vmem:[%s6 + $0x548] sm:$0xff]
    %v1457 = vld [vmem:[%s6 + $0x550] sm:$0xff]
    %v1458 = vld [vmem:[%s6 + $0x558] sm:$0xff]
    %v1459 = vld [vmem:[%s6 + $0x560] sm:$0xff]
    %v1460 = vld [vmem:[%s6 + $0x568] sm:$0xff]
    %v1461 = vld [vmem:[%s6 + $0x570] sm:$0xff]
    %v1462 = vld [vmem:[%s6 + $0x578] sm:$0xff]
    %v1463 = vld [vmem:[%s6 + $0x580] sm:$0xff]
    %v1464 = vld [vmem:[%s6 + $0x588] sm:$0xff]
    %v1465 = vld [vmem:[%s6 + $0x590] sm:$0xff]
    %v1466 = vld [vmem:[%s6 + $0x598] sm:$0xff]
    %v1467 = vld [vmem:[%s6 + $0x5a0] sm:$0xff]
    %v1468 = vld [vmem:[%s6 + $0x5a8] sm:$0xff]
    %v1469 = vld [vmem:[%s6 + $0x5b0] sm:$0xff]
    %v1470 = vld [vmem:[%s6 + $0x5b8] sm:$0xff]
    %v1471 = vld [vmem:[%s6 + $0x5c0] sm:$0xff]
    %v1472 = vld [vmem:[%s6 + $0x5c8] sm:$0xff]
    %v1473 = vld [vmem:[%s6 + $0x5d0] sm:$0xff]
    %v1474 = vld [vmem:[%s6 + $0x5d8] sm:$0xff]
    %v1475 = vld [vmem:[%s6 + $0x5e0] sm:$0xff]
    %v1476 = vld [vmem:[%s6 + $0x5e8] sm:$0xff]
    %v1477 = vld [vmem:[%s6 + $0x5f0] sm:$0xff]
    %v1478 = vld [vmem:[%s6 + $0x5f8] sm:$0xff]
    %v1479 = vld [vmem:[%s6 + $0x600] sm:$0xff]
    %v1480 = vld [vmem:[%s6 + $0x608] sm:$0xff]
    %v1481 = vld [vmem:[%s6 + $0x610] sm:$0xff]
    %v1482 = vld [vmem:[%s6 + $0x618] sm:$0xff]
    %v1483 = vld [vmem:[%s6 + $0x620] sm:$0xff]
    %v1484 = vld [vmem:[%s6 + $0x628] sm:$0xff]
    %v1485 = vld [vmem:[%s6 + $0x630] sm:$0xff]
    %v1486 = vld [vmem:[%s6 + $0x638] sm:$0xff]
    %v1487 = vld [vmem:[%s6 + $0x640] sm:$0xff]
    %v1488 = vld [vmem:[%s6 + $0x648] sm:$0xff]
    %v1489 = vld [vmem:[%s6 + $0x650] sm:$0xff]
    %v1490 = vld [vmem:[%s6 + $0x658] sm:$0xff]
    %v1491 = vld [vmem:[%s6 + $0x660] sm:$0xff]
    %v1492 = vld [vmem:[%s6 + $0x668] sm:$0xff]
    %v1493 = vld [vmem:[%s6 + $0x670] sm:$0xff]
    %v1494 = vld [vmem:[%s6 + $0x678] sm:$0xff]
    %v1495 = vld [vmem:[%s6 + $0x680] sm:$0xff]
    %v1496 = vld [vmem:[%s6 + $0x688] sm:$0xff]
    %v1497 = vld [vmem:[%s6 + $0x690] sm:$0xff]
    %v1498 = vld [vmem:[%s6 + $0x698] sm:$0xff]
    %v1499 = vld [vmem:[%s6 + $0x6a0] sm:$0xff]
    %v1500 = vld [vmem:[%s6 + $0x6a8] sm:$0xff]
    %v1501 = vld [vmem:[%s6 + $0x6b0] sm:$0xff]
    %v1502 = vld [vmem:[%s6 + $0x6b8] sm:$0xff]
    %v1503 = vld [vmem:[%s6 + $0x6c0] sm:$0xff]
    %v1504 = vld [vmem:[%s6 + $0x6c8] sm:$0xff]
    %v1505 = vld [vmem:[%s6 + $0x6d0] sm:$0xff]
    %v1506 = vld [vmem:[%s6 + $0x6d8] sm:$0xff]
    %v1507 = vld [vmem:[%s6 + $0x6e0] sm:$0xff]
    %v1508 = vld [vmem:[%s6 + $0x6e8] sm:$0xff]
    %v1509 = vld [vmem:[%s6 + $0x6f0] sm:$0xff]
    %v1510 = vld [vmem:[%s6 + $0x6f8] sm:$0xff]
    %v1511 = vld [vmem:[%s6 + $0x700] sm:$0xff]
    %v1512 = vld [vmem:[%s6 + $0x708] sm:$0xff]
    %v1513 = vld [vmem:[%s6 + $0x710] sm:$0xff]
    %v1514 = vld [vmem:[%s6 + $0x718] sm:$0xff]
    %v1515 = vld [vmem:[%s6 + $0x720] sm:$0xff]
    %v1516 = vld [vmem:[%s6 + $0x728] sm:$0xff]
    %v1517 = vld [vmem:[%s6 + $0x730] sm:$0xff]
    %v1518 = vld [vmem:[%s6 + $0x738] sm:$0xff]
    %v1519 = vld [vmem:[%s6 + $0x740] sm:$0xff]
    %v1520 = vld [vmem:[%s6 + $0x748] sm:$0xff]
    %v1521 = vld [vmem:[%s6 + $0x750] sm:$0xff]
    %v1522 = vld [vmem:[%s6 + $0x758] sm:$0xff]
    %v1523 = vld [vmem:[%s6 + $0x760] sm:$0xff]
    %v1524 = vld [vmem:[%s6 + $0x768] sm:$0xff]
    %v1525 = vld [vmem:[%s6 + $0x770] sm:$0xff]
    %v1526 = vld [vmem:[%s6 + $0x778] sm:$0xff]
    %v1527 = vld [vmem:[%s6 + $0x780] sm:$0xff]
    %v1528 = vld [vmem:[%s6 + $0x788] sm:$0xff]
    %v1529 = vld [vmem:[%s6 + $0x790] sm:$0xff]
    %v1530 = vld [vmem:[%s6 + $0x798] sm:$0xff]
    %v1531 = vld [vmem:[%s6 + $0x7a0] sm:$0xff]
    %v1532 = vld [vmem:[%s6 + $0x7a8] sm:$0xff]
    %v1533 = vld [vmem:[%s6 + $0x7b0] sm:$0xff]
    %v1534 = vld [vmem:[%s6 + $0x7b8] sm:$0xff]
    %v1535 = vld [vmem:[%s6 + $0x7c0] sm:$0xff]
    %v1536 = vld [vmem:[%s6 + $0x7c8] sm:$0xff]
    %v1537 = vld [vmem:[%s6 + $0x7d0] sm:$0xff]
    %v1538 = vld [vmem:[%s6 + $0x7d8] sm:$0xff]
    %v1539 = vld [vmem:[%s6 + $0x7e0] sm:$0xff]
    %v1540 = vld [vmem:[%s6 + $0x7e8] sm:$0xff]
    %v1541 = vld [vmem:[%s6 + $0x7f0] sm:$0xff]
    %v1542 = vld [vmem:[%s6 + $0x7f8] sm:$0xff]
    %v1543 = vld [vmem:[%s7] sm:$0x1]
    %v1545 = vlaneseq
    %v1546 = vshrl.u32 %v1545, 7
    %v1547 = vsub.s32 0, %v1546
    %v1548 = vrot.slane %v1543, %v1547
    %v1554 = vcombine.high %v1283, %v1283
    %v1556 = vunpack.c.l.s4 1983009808
    %v1557 = vunpack.c.0.s8 %v1556
    %v1558 = vlaneseq
    %v1559 = vshrl.u32 %v1558, 7
    %v1560 = vsub.s32 %v1557, %v1559
    %v1561 = vrot.slane %v1283, %v1560
    %v1563 = vunpack.c.l.s4 1983009808
    %v1564 = vunpack.c.0.s8 %v1563
    %v1565 = vlaneseq
    %v1566 = vshrl.u32 %v1565, 7
    %v1567 = vsub.s32 %v1564, %v1566
    %v1568 = vrot.slane %v1554, %v1567
    %v1569 = vcombine.high %v1561, %v1561
    %v1570 = vcombine.high %v1568, %v1568
    %v1571 = vcombine.high %v1284, %v1284
    %v1573 = vunpack.c.l.s4 1983009808
    %v1574 = vunpack.c.0.s8 %v1573
    %v1575 = vlaneseq
    %v1576 = vshrl.u32 %v1575, 7
    %v1577 = vsub.s32 %v1574, %v1576
    %v1578 = vrot.slane %v1284, %v1577
    %v1580 = vunpack.c.l.s4 1983009808
    %v1581 = vunpack.c.0.s8 %v1580
    %v1582 = vlaneseq
    %v1583 = vshrl.u32 %v1582, 7
    %v1584 = vsub.s32 %v1581, %v1583
    %v1585 = vrot.slane %v1571, %v1584
    %v1586 = vcombine.high %v1578, %v1578
    %v1587 = vcombine.high %v1585, %v1585
    %v1588 = vcombine.high %v1285, %v1285
    %v1590 = vunpack.c.l.s4 1983009808
    %v1591 = vunpack.c.0.s8 %v1590
    %v1592 = vlaneseq
    %v1593 = vshrl.u32 %v1592, 7
    %v1594 = vsub.s32 %v1591, %v1593
    %v1595 = vrot.slane %v1285, %v1594
    %v1597 = vunpack.c.l.s4 1983009808
    %v1598 = vunpack.c.0.s8 %v1597
    %v1599 = vlaneseq
    %v1600 = vshrl.u32 %v1599, 7
    %v1601 = vsub.s32 %v1598, %v1600
    %v1602 = vrot.slane %v1588, %v1601
    %v1603 = vcombine.high %v1595, %v1595
    %v1604 = vcombine.high %v1602, %v1602
    %v1605 = vcombine.high %v1286, %v1286
    %v1607 = vunpack.c.l.s4 1983009808
    %v1608 = vunpack.c.0.s8 %v1607
    %v1609 = vlaneseq
    %v1610 = vshrl.u32 %v1609, 7
    %v1611 = vsub.s32 %v1608, %v1610
    %v1612 = vrot.slane %v1286, %v1611
    %v1614 = vunpack.c.l.s4 1983009808
    %v1615 = vunpack.c.0.s8 %v1614
    %v1616 = vlaneseq
    %v1617 = vshrl.u32 %v1616, 7
    %v1618 = vsub.s32 %v1615, %v1617
    %v1619 = vrot.slane %v1605, %v1618
    %v1620 = vcombine.high %v1612, %v1612
    %v1621 = vcombine.high %v1619, %v1619
    %1638 = vmatprep.subr.mxu0 0.0
    %1639 = vmatpush1.msra.mxu0 %v1287
    %1640 = vmatprep.subr.mxu0 0.0
    %1641 = vmatpush1.msra.mxu0 %v1288
    %1642 = vmatprep.subr.mxu0 0.0
    %1643 = vmatpush1.msra.mxu0 %v1289
    %1644 = vmatprep.subr.mxu0 0.0
    %1645 = vmatpush1.msra.mxu0 %v1290
    %1646 = vmatprep.subr.mxu0 0.0
    %1647 = vmatpush1.msra.mxu0 %v1291
    %1648 = vmatprep.subr.mxu0 0.0
    %1649 = vmatpush1.msra.mxu0 %v1292
    %1650 = vmatprep.subr.mxu0 0.0
    %1651 = vmatpush1.msra.mxu0 %v1293
    %1652 = vmatprep.subr.mxu0 0.0
    %1653 = vmatpush1.msra.mxu0 %v1294
    %1654 = vmatprep.subr.mxu0 0.0
    %1655 = vmatpush1.msra.mxu0 %v1295
    %1656 = vmatprep.subr.mxu0 0.0
    %1657 = vmatpush1.msra.mxu0 %v1296
    %1658 = vmatprep.subr.mxu0 0.0
    %1659 = vmatpush1.msra.mxu0 %v1297
    %1660 = vmatprep.subr.mxu0 0.0
    %1661 = vmatpush1.msra.mxu0 %v1298
    %1662 = vmatprep.subr.mxu0 0.0
    %1663 = vmatpush1.msra.mxu0 %v1299
    %1664 = vmatprep.subr.mxu0 0.0
    %1665 = vmatpush1.msra.mxu0 %v1300
    %1666 = vmatprep.subr.mxu0 0.0
    %1667 = vmatpush1.msra.mxu0 %v1301
    %1668 = vmatprep.subr.mxu0 0.0
    %1669 = vmatpush1.msra.mxu0 %v1302
    %1670 = vmatprep.subr.mxu0 0.0
    %1671 = vmatpush1.msra.mxu0 %v1303
    %1672 = vmatprep.subr.mxu0 0.0
    %1673 = vmatpush1.msra.mxu0 %v1304
    %1674 = vmatprep.subr.mxu0 0.0
    %1675 = vmatpush1.msra.mxu0 %v1305
    %1676 = vmatprep.subr.mxu0 0.0
    %1677 = vmatpush1.msra.mxu0 %v1306
    %1678 = vmatprep.subr.mxu0 0.0
    %1679 = vmatpush1.msra.mxu0 %v1307
    %1680 = vmatprep.subr.mxu0 0.0
    %1681 = vmatpush1.msra.mxu0 %v1308
    %1682 = vmatprep.subr.mxu0 0.0
    %1683 = vmatpush1.msra.mxu0 %v1309
    %1684 = vmatprep.subr.mxu0 0.0
    %1685 = vmatpush1.msra.mxu0 %v1310
    %1686 = vmatprep.subr.mxu0 0.0
    %1687 = vmatpush1.msra.mxu0 %v1311
    %1688 = vmatprep.subr.mxu0 0.0
    %1689 = vmatpush1.msra.mxu0 %v1312
    %1690 = vmatprep.subr.mxu0 0.0
    %1691 = vmatpush1.msra.mxu0 %v1313
    %1692 = vmatprep.subr.mxu0 0.0
    %1693 = vmatpush1.msra.mxu0 %v1314
    %1694 = vmatprep.subr.mxu0 0.0
    %1695 = vmatpush1.msra.mxu0 %v1315
    %1696 = vmatprep.subr.mxu0 0.0
    %1697 = vmatpush1.msra.mxu0 %v1316
    %1698 = vmatprep.subr.mxu0 0.0
    %1699 = vmatpush1.msra.mxu0 %v1317
    %1700 = vmatprep.subr.mxu0 0.0
    %1701 = vmatpush1.msra.mxu0 %v1318
    %1702 = vmatprep.mubr.f32.mxu0 %v1569
    %1703 = vmatmul.mubr.f32.gmra.mrb[0].mxu0 %v1561
    %v1704 = vpop.f32.mrb[0].mxu0
    %v1705 = vadd.f32 %v1548, %v1704
    %v1706 = vpop.f32.mrb[0].mxu0
    %1707 = vdwg.mxu0
    %1708 = vmatprep.subr.mxu0 0.0
    %1709 = vmatpush1.msra.mxu0 %v1319
    %1710 = vmatprep.subr.mxu0 0.0
    %1711 = vmatpush1.msra.mxu0 %v1320
    %1712 = vmatprep.subr.mxu0 0.0
    %1713 = vmatpush1.msra.mxu0 %v1321
    %1714 = vmatprep.subr.mxu0 0.0
    %1715 = vmatpush1.msra.mxu0 %v1322
    %1716 = vmatprep.subr.mxu0 0.0
    %1717 = vmatpush1.msra.mxu0 %v1323
    %1718 = vmatprep.subr.mxu0 0.0
    %1719 = vmatpush1.msra.mxu0 %v1324
    %1720 = vmatprep.subr.mxu0 0.0
    %1721 = vmatpush1.msra.mxu0 %v1325
    %1722 = vmatprep.subr.mxu0 0.0
    %1723 = vmatpush1.msra.mxu0 %v1326
    %1724 = vmatprep.subr.mxu0 0.0
    %1725 = vmatpush1.msra.mxu0 %v1327
    %1726 = vmatprep.subr.mxu0 0.0
    %1727 = vmatpush1.msra.mxu0 %v1328
    %1728 = vmatprep.subr.mxu0 0.0
    %1729 = vmatpush1.msra.mxu0 %v1329
    %1730 = vmatprep.subr.mxu0 0.0
    %1731 = vmatpush1.msra.mxu0 %v1330
    %1732 = vmatprep.subr.mxu0 0.0
    %1733 = vmatpush1.msra.mxu0 %v1331
    %1734 = vmatprep.subr.mxu0 0.0
    %1735 = vmatpush1.msra.mxu0 %v1332
    %1736 = vmatprep.subr.mxu0 0.0
    %1737 = vmatpush1.msra.mxu0 %v1333
    %1738 = vmatprep.subr.mxu0 0.0
    %1739 = vmatpush1.msra.mxu0 %v1334
    %1740 = vmatprep.subr.mxu0 0.0
    %1741 = vmatpush1.msra.mxu0 %v1335
    %1742 = vmatprep.subr.mxu0 0.0
    %1743 = vmatpush1.msra.mxu0 %v1336
    %1744 = vmatprep.subr.mxu0 0.0
    %1745 = vmatpush1.msra.mxu0 %v1337
    %1746 = vmatprep.subr.mxu0 0.0
    %1747 = vmatpush1.msra.mxu0 %v1338
    %1748 = vmatprep.subr.mxu0 0.0
    %1749 = vmatpush1.msra.mxu0 %v1339
    %1750 = vmatprep.subr.mxu0 0.0
    %1751 = vmatpush1.msra.mxu0 %v1340
    %1752 = vmatprep.subr.mxu0 0.0
    %1753 = vmatpush1.msra.mxu0 %v1341
    %1754 = vmatprep.subr.mxu0 0.0
    %1755 = vmatpush1.msra.mxu0 %v1342
    %1756 = vmatprep.subr.mxu0 0.0
    %1757 = vmatpush1.msra.mxu0 %v1343
    %1758 = vmatprep.subr.mxu0 0.0
    %1759 = vmatpush1.msra.mxu0 %v1344
    %1760 = vmatprep.subr.mxu0 0.0
    %1761 = vmatpush1.msra.mxu0 %v1345
    %1762 = vmatprep.subr.mxu0 0.0
    %1763 = vmatpush1.msra.mxu0 %v1346
    %1764 = vmatprep.subr.mxu0 0.0
    %1765 = vmatpush1.msra.mxu0 %v1347
    %1766 = vmatprep.subr.mxu0 0.0
    %1767 = vmatpush1.msra.mxu0 %v1348
    %1768 = vmatprep.subr.mxu0 0.0
    %1769 = vmatpush1.msra.mxu0 %v1349
    %1770 = vmatprep.subr.mxu0 0.0
    %1771 = vmatpush1.msra.mxu0 %v1350
    %1772 = vmatprep.mubr.f32.mxu0 %v1570
    %1773 = vmatmul.mubr.f32.gmra.mrb[0].mxu0 %v1568
    %v1774 = vpop.f32.mrb[0].mxu0
    %v1775 = vadd.f32 %v1705, %v1774
    %v1776 = vpop.f32.mrb[0].mxu0
    %1777 = vdwg.mxu0
    %1778 = vmatprep.subr.mxu0 0.0
    %1779 = vmatpush1.msra.mxu0 %v1351
    %1780 = vmatprep.subr.mxu0 0.0
    %1781 = vmatpush1.msra.mxu0 %v1352
    %1782 = vmatprep.subr.mxu0 0.0
    %1783 = vmatpush1.msra.mxu0 %v1353
    %1784 = vmatprep.subr.mxu0 0.0
    %1785 = vmatpush1.msra.mxu0 %v1354
    %1786 = vmatprep.subr.mxu0 0.0
    %1787 = vmatpush1.msra.mxu0 %v1355
    %1788 = vmatprep.subr.mxu0 0.0
    %1789 = vmatpush1.msra.mxu0 %v1356
    %1790 = vmatprep.subr.mxu0 0.0
    %1791 = vmatpush1.msra.mxu0 %v1357
    %1792 = vmatprep.subr.mxu0 0.0
    %1793 = vmatpush1.msra.mxu0 %v1358
    %1794 = vmatprep.subr.mxu0 0.0
    %1795 = vmatpush1.msra.mxu0 %v1359
    %1796 = vmatprep.subr.mxu0 0.0
    %1797 = vmatpush1.msra.mxu0 %v1360
    %1798 = vmatprep.subr.mxu0 0.0
    %1799 = vmatpush1.msra.mxu0 %v1361
    %1800 = vmatprep.subr.mxu0 0.0
    %1801 = vmatpush1.msra.mxu0 %v1362
    %1802 = vmatprep.subr.mxu0 0.0
    %1803 = vmatpush1.msra.mxu0 %v1363
    %1804 = vmatprep.subr.mxu0 0.0
    %1805 = vmatpush1.msra.mxu0 %v1364
    %1806 = vmatprep.subr.mxu0 0.0
    %1807 = vmatpush1.msra.mxu0 %v1365
    %1808 = vmatprep.subr.mxu0 0.0
    %1809 = vmatpush1.msra.mxu0 %v1366
    %1810 = vmatprep.subr.mxu0 0.0
    %1811 = vmatpush1.msra.mxu0 %v1367
    %1812 = vmatprep.subr.mxu0 0.0
    %1813 = vmatpush1.msra.mxu0 %v1368
    %1814 = vmatprep.subr.mxu0 0.0
    %1815 = vmatpush1.msra.mxu0 %v1369
    %1816 = vmatprep.subr.mxu0 0.0
    %1817 = vmatpush1.msra.mxu0 %v1370
    %1818 = vmatprep.subr.mxu0 0.0
    %1819 = vmatpush1.msra.mxu0 %v1371
    %1820 = vmatprep.subr.mxu0 0.0
    %1821 = vmatpush1.msra.mxu0 %v1372
    %1822 = vmatprep.subr.mxu0 0.0
    %1823 = vmatpush1.msra.mxu0 %v1373
    %1824 = vmatprep.subr.mxu0 0.0
    %1825 = vmatpush1.msra.mxu0 %v1374
    %1826 = vmatprep.subr.mxu0 0.0
    %1827 = vmatpush1.msra.mxu0 %v1375
    %1828 = vmatprep.subr.mxu0 0.0
    %1829 = vmatpush1.msra.mxu0 %v1376
    %1830 = vmatprep.subr.mxu0 0.0
    %1831 = vmatpush1.msra.mxu0 %v1377
    %1832 = vmatprep.subr.mxu0 0.0
    %1833 = vmatpush1.msra.mxu0 %v1378
    %1834 = vmatprep.subr.mxu0 0.0
    %1835 = vmatpush1.msra.mxu0 %v1379
    %1836 = vmatprep.subr.mxu0 0.0
    %1837 = vmatpush1.msra.mxu0 %v1380
    %1838 = vmatprep.subr.mxu0 0.0
    %1839 = vmatpush1.msra.mxu0 %v1381
    %1840 = vmatprep.subr.mxu0 0.0
    %1841 = vmatpush1.msra.mxu0 %v1382
    %1842 = vmatprep.mubr.f32.mxu0 %v1586
    %1843 = vmatmul.mubr.f32.gmra.mrb[0].mxu0 %v1578
    %v1844 = vpop.f32.mrb[0].mxu0
    %v1845 = vadd.f32 %v1775, %v1844
    %v1846 = vpop.f32.mrb[0].mxu0
    %1847 = vdwg.mxu0
    %1848 = vmatprep.subr.mxu0 0.0
    %1849 = vmatpush1.msra.mxu0 %v1383
    %1850 = vmatprep.subr.mxu0 0.0
    %1851 = vmatpush1.msra.mxu0 %v1384
    %1852 = vmatprep.subr.mxu0 0.0
    %1853 = vmatpush1.msra.mxu0 %v1385
    %1854 = vmatprep.subr.mxu0 0.0
    %1855 = vmatpush1.msra.mxu0 %v1386
    %1856 = vmatprep.subr.mxu0 0.0
    %1857 = vmatpush1.msra.mxu0 %v1387
    %1858 = vmatprep.subr.mxu0 0.0
    %1859 = vmatpush1.msra.mxu0 %v1388
    %1860 = vmatprep.subr.mxu0 0.0
    %1861 = vmatpush1.msra.mxu0 %v1389
    %1862 = vmatprep.subr.mxu0 0.0
    %1863 = vmatpush1.msra.mxu0 %v1390
    %1864 = vmatprep.subr.mxu0 0.0
    %1865 = vmatpush1.msra.mxu0 %v1391
    %1866 = vmatprep.subr.mxu0 0.0
    %1867 = vmatpush1.msra.mxu0 %v1392
    %1868 = vmatprep.subr.mxu0 0.0
    %1869 = vmatpush1.msra.mxu0 %v1393
    %1870 = vmatprep.subr.mxu0 0.0
    %1871 = vmatpush1.msra.mxu0 %v1394
    %1872 = vmatprep.subr.mxu0 0.0
    %1873 = vmatpush1.msra.mxu0 %v1395
    %1874 = vmatprep.subr.mxu0 0.0
    %1875 = vmatpush1.msra.mxu0 %v1396
    %1876 = vmatprep.subr.mxu0 0.0
    %1877 = vmatpush1.msra.mxu0 %v1397
    %1878 = vmatprep.subr.mxu0 0.0
    %1879 = vmatpush1.msra.mxu0 %v1398
    %1880 = vmatprep.subr.mxu0 0.0
    %1881 = vmatpush1.msra.mxu0 %v1399
    %1882 = vmatprep.subr.mxu0 0.0
    %1883 = vmatpush1.msra.mxu0 %v1400
    %1884 = vmatprep.subr.mxu0 0.0
    %1885 = vmatpush1.msra.mxu0 %v1401
    %1886 = vmatprep.subr.mxu0 0.0
    %1887 = vmatpush1.msra.mxu0 %v1402
    %1888 = vmatprep.subr.mxu0 0.0
    %1889 = vmatpush1.msra.mxu0 %v1403
    %1890 = vmatprep.subr.mxu0 0.0
    %1891 = vmatpush1.msra.mxu0 %v1404
    %1892 = vmatprep.subr.mxu0 0.0
    %1893 = vmatpush1.msra.mxu0 %v1405
    %1894 = vmatprep.subr.mxu0 0.0
    %1895 = vmatpush1.msra.mxu0 %v1406
    %1896 = vmatprep.subr.mxu0 0.0
    %1897 = vmatpush1.msra.mxu0 %v1407
    %1898 = vmatprep.subr.mxu0 0.0
    %1899 = vmatpush1.msra.mxu0 %v1408
    %1900 = vmatprep.subr.mxu0 0.0
    %1901 = vmatpush1.msra.mxu0 %v1409
    %1902 = vmatprep.subr.mxu0 0.0
    %1903 = vmatpush1.msra.mxu0 %v1410
    %1904 = vmatprep.subr.mxu0 0.0
    %1905 = vmatpush1.msra.mxu0 %v1411
    %1906 = vmatprep.subr.mxu0 0.0
    %1907 = vmatpush1.msra.mxu0 %v1412
    %1908 = vmatprep.subr.mxu0 0.0
    %1909 = vmatpush1.msra.mxu0 %v1413
    %1910 = vmatprep.subr.mxu0 0.0
    %1911 = vmatpush1.msra.mxu0 %v1414
    %1912 = vmatprep.mubr.f32.mxu0 %v1587
    %1913 = vmatmul.mubr.f32.gmra.mrb[0].mxu0 %v1585
    %v1914 = vpop.f32.mrb[0].mxu0
    %v1915 = vadd.f32 %v1845, %v1914
    %v1916 = vpop.f32.mrb[0].mxu0
    %1917 = vdwg.mxu0
    %1918 = vmatprep.subr.mxu0 0.0
    %1919 = vmatpush1.msra.mxu0 %v1415
    %1920 = vmatprep.subr.mxu0 0.0
    %1921 = vmatpush1.msra.mxu0 %v1416
    %1922 = vmatprep.subr.mxu0 0.0
    %1923 = vmatpush1.msra.mxu0 %v1417
    %1924 = vmatprep.subr.mxu0 0.0
    %1925 = vmatpush1.msra.mxu0 %v1418
    %1926 = vmatprep.subr.mxu0 0.0
    %1927 = vmatpush1.msra.mxu0 %v1419
    %1928 = vmatprep.subr.mxu0 0.0
    %1929 = vmatpush1.msra.mxu0 %v1420
    %1930 = vmatprep.subr.mxu0 0.0
    %1931 = vmatpush1.msra.mxu0 %v1421
    %1932 = vmatprep.subr.mxu0 0.0
    %1933 = vmatpush1.msra.mxu0 %v1422
    %1934 = vmatprep.subr.mxu0 0.0
    %1935 = vmatpush1.msra.mxu0 %v1423
    %1936 = vmatprep.subr.mxu0 0.0
    %1937 = vmatpush1.msra.mxu0 %v1424
    %1938 = vmatprep.subr.mxu0 0.0
    %1939 = vmatpush1.msra.mxu0 %v1425
    %1940 = vmatprep.subr.mxu0 0.0
    %1941 = vmatpush1.msra.mxu0 %v1426
    %1942 = vmatprep.subr.mxu0 0.0
    %1943 = vmatpush1.msra.mxu0 %v1427
    %1944 = vmatprep.subr.mxu0 0.0
    %1945 = vmatpush1.msra.mxu0 %v1428
    %1946 = vmatprep.subr.mxu0 0.0
    %1947 = vmatpush1.msra.mxu0 %v1429
    %1948 = vmatprep.subr.mxu0 0.0
    %1949 = vmatpush1.msra.mxu0 %v1430
    %1950 = vmatprep.subr.mxu0 0.0
    %1951 = vmatpush1.msra.mxu0 %v1431
    %1952 = vmatprep.subr.mxu0 0.0
    %1953 = vmatpush1.msra.mxu0 %v1432
    %1954 = vmatprep.subr.mxu0 0.0
    %1955 = vmatpush1.msra.mxu0 %v1433
    %1956 = vmatprep.subr.mxu0 0.0
    %1957 = vmatpush1.msra.mxu0 %v1434
    %1958 = vmatprep.subr.mxu0 0.0
    %1959 = vmatpush1.msra.mxu0 %v1435
    %1960 = vmatprep.subr.mxu0 0.0
    %1961 = vmatpush1.msra.mxu0 %v1436
    %1962 = vmatprep.subr.mxu0 0.0
    %1963 = vmatpush1.msra.mxu0 %v1437
    %1964 = vmatprep.subr.mxu0 0.0
    %1965 = vmatpush1.msra.mxu0 %v1438
    %1966 = vmatprep.subr.mxu0 0.0
    %1967 = vmatpush1.msra.mxu0 %v1439
    %1968 = vmatprep.subr.mxu0 0.0
    %1969 = vmatpush1.msra.mxu0 %v1440
    %1970 = vmatprep.subr.mxu0 0.0
    %1971 = vmatpush1.msra.mxu0 %v1441
    %1972 = vmatprep.subr.mxu0 0.0
    %1973 = vmatpush1.msra.mxu0 %v1442
    %1974 = vmatprep.subr.mxu0 0.0
    %1975 = vmatpush1.msra.mxu0 %v1443
    %1976 = vmatprep.subr.mxu0 0.0
    %1977 = vmatpush1.msra.mxu0 %v1444
    %1978 = vmatprep.subr.mxu0 0.0
    %1979 = vmatpush1.msra.mxu0 %v1445
    %1980 = vmatprep.subr.mxu0 0.0
    %1981 = vmatpush1.msra.mxu0 %v1446
    %1982 = vmatprep.mubr.f32.mxu0 %v1603
    %1983 = vmatmul.mubr.f32.gmra.mrb[0].mxu0 %v1595
    %v1984 = vpop.f32.mrb[0].mxu0
    %v1985 = vadd.f32 %v1915, %v1984
    %v1986 = vpop.f32.mrb[0].mxu0
    %1987 = vdwg.mxu0
    %1988 = vmatprep.subr.mxu0 0.0
    %1989 = vmatpush1.msra.mxu0 %v1447
    %1990 = vmatprep.subr.mxu0 0.0
    %1991 = vmatpush1.msra.mxu0 %v1448
    %1992 = vmatprep.subr.mxu0 0.0
    %1993 = vmatpush1.msra.mxu0 %v1449
    %1994 = vmatprep.subr.mxu0 0.0
    %1995 = vmatpush1.msra.mxu0 %v1450
    %1996 = vmatprep.subr.mxu0 0.0
    %1997 = vmatpush1.msra.mxu0 %v1451
    %1998 = vmatprep.subr.mxu0 0.0
    %1999 = vmatpush1.msra.mxu0 %v1452
    %2000 = vmatprep.subr.mxu0 0.0
    %2001 = vmatpush1.msra.mxu0 %v1453
    %2002 = vmatprep.subr.mxu0 0.0
    %2003 = vmatpush1.msra.mxu0 %v1454
    %2004 = vmatprep.subr.mxu0 0.0
    %2005 = vmatpush1.msra.mxu0 %v1455
    %2006 = vmatprep.subr.mxu0 0.0
    %2007 = vmatpush1.msra.mxu0 %v1456
    %2008 = vmatprep.subr.mxu0 0.0
    %2009 = vmatpush1.msra.mxu0 %v1457
    %2010 = vmatprep.subr.mxu0 0.0
    %2011 = vmatpush1.msra.mxu0 %v1458
    %2012 = vmatprep.subr.mxu0 0.0
    %2013 = vmatpush1.msra.mxu0 %v1459
    %2014 = vmatprep.subr.mxu0 0.0
    %2015 = vmatpush1.msra.mxu0 %v1460
    %2016 = vmatprep.subr.mxu0 0.0
    %2017 = vmatpush1.msra.mxu0 %v1461
    %2018 = vmatprep.subr.mxu0 0.0
    %2019 = vmatpush1.msra.mxu0 %v1462
    %2020 = vmatprep.subr.mxu0 0.0
    %2021 = vmatpush1.msra.mxu0 %v1463
    %2022 = vmatprep.subr.mxu0 0.0
    %2023 = vmatpush1.msra.mxu0 %v1464
    %2024 = vmatprep.subr.mxu0 0.0
    %2025 = vmatpush1.msra.mxu0 %v1465
    %2026 = vmatprep.subr.mxu0 0.0
    %2027 = vmatpush1.msra.mxu0 %v1466
    %2028 = vmatprep.subr.mxu0 0.0
    %2029 = vmatpush1.msra.mxu0 %v1467
    %2030 = vmatprep.subr.mxu0 0.0
    %2031 = vmatpush1.msra.mxu0 %v1468
    %2032 = vmatprep.subr.mxu0 0.0
    %2033 = vmatpush1.msra.mxu0 %v1469
    %2034 = vmatprep.subr.mxu0 0.0
    %2035 = vmatpush1.msra.mxu0 %v1470
    %2036 = vmatprep.subr.mxu0 0.0
    %2037 = vmatpush1.msra.mxu0 %v1471
    %2038 = vmatprep.subr.mxu0 0.0
    %2039 = vmatpush1.msra.mxu0 %v1472
    %2040 = vmatprep.subr.mxu0 0.0
    %2041 = vmatpush1.msra.mxu0 %v1473
    %2042 = vmatprep.subr.mxu0 0.0
    %2043 = vmatpush1.msra.mxu0 %v1474
    %2044 = vmatprep.subr.mxu0 0.0
    %2045 = vmatpush1.msra.mxu0 %v1475
    %2046 = vmatprep.subr.mxu0 0.0
    %2047 = vmatpush1.msra.mxu0 %v1476
    %2048 = vmatprep.subr.mxu0 0.0
    %2049 = vmatpush1.msra.mxu0 %v1477
    %2050 = vmatprep.subr.mxu0 0.0
    %2051 = vmatpush1.msra.mxu0 %v1478
    %2052 = vmatprep.mubr.f32.mxu0 %v1604
    %2053 = vmatmul.mubr.f32.gmra.mrb[0].mxu0 %v1602
    %v2054 = vpop.f32.mrb[0].mxu0
    %v2055 = vadd.f32 %v1985, %v2054
    %v2056 = vpop.f32.mrb[0].mxu0
    %2057 = vdwg.mxu0
    %2058 = vmatprep.subr.mxu0 0.0
    %2059 = vmatpush1.msra.mxu0 %v1479
    %2060 = vmatprep.subr.mxu0 0.0
    %2061 = vmatpush1.msra.mxu0 %v1480
    %2062 = vmatprep.subr.mxu0 0.0
    %2063 = vmatpush1.msra.mxu0 %v1481
    %2064 = vmatprep.subr.mxu0 0.0
    %2065 = vmatpush1.msra.mxu0 %v1482
    %2066 = vmatprep.subr.mxu0 0.0
    %2067 = vmatpush1.msra.mxu0 %v1483
    %2068 = vmatprep.subr.mxu0 0.0
    %2069 = vmatpush1.msra.mxu0 %v1484
    %2070 = vmatprep.subr.mxu0 0.0
    %2071 = vmatpush1.msra.mxu0 %v1485
    %2072 = vmatprep.subr.mxu0 0.0
    %2073 = vmatpush1.msra.mxu0 %v1486
    %2074 = vmatprep.subr.mxu0 0.0
    %2075 = vmatpush1.msra.mxu0 %v1487
    %2076 = vmatprep.subr.mxu0 0.0
    %2077 = vmatpush1.msra.mxu0 %v1488
    %2078 = vmatprep.subr.mxu0 0.0
    %2079 = vmatpush1.msra.mxu0 %v1489
    %2080 = vmatprep.subr.mxu0 0.0
    %2081 = vmatpush1.msra.mxu0 %v1490
    %2082 = vmatprep.subr.mxu0 0.0
    %2083 = vmatpush1.msra.mxu0 %v1491
    %2084 = vmatprep.subr.mxu0 0.0
    %2085 = vmatpush1.msra.mxu0 %v1492
    %2086 = vmatprep.subr.mxu0 0.0
    %2087 = vmatpush1.msra.mxu0 %v1493
    %2088 = vmatprep.subr.mxu0 0.0
    %2089 = vmatpush1.msra.mxu0 %v1494
    %2090 = vmatprep.subr.mxu0 0.0
    %2091 = vmatpush1.msra.mxu0 %v1495
    %2092 = vmatprep.subr.mxu0 0.0
    %2093 = vmatpush1.msra.mxu0 %v1496
    %2094 = vmatprep.subr.mxu0 0.0
    %2095 = vmatpush1.msra.mxu0 %v1497
    %2096 = vmatprep.subr.mxu0 0.0
    %2097 = vmatpush1.msra.mxu0 %v1498
    %2098 = vmatprep.subr.mxu0 0.0
    %2099 = vmatpush1.msra.mxu0 %v1499
    %2100 = vmatprep.subr.mxu0 0.0
    %2101 = vmatpush1.msra.mxu0 %v1500
    %2102 = vmatprep.subr.mxu0 0.0
    %2103 = vmatpush1.msra.mxu0 %v1501
    %2104 = vmatprep.subr.mxu0 0.0
    %2105 = vmatpush1.msra.mxu0 %v1502
    %2106 = vmatprep.subr.mxu0 0.0
    %2107 = vmatpush1.msra.mxu0 %v1503
    %2108 = vmatprep.subr.mxu0 0.0
    %2109 = vmatpush1.msra.mxu0 %v1504
    %2110 = vmatprep.subr.mxu0 0.0
    %2111 = vmatpush1.msra.mxu0 %v1505
    %2112 = vmatprep.subr.mxu0 0.0
    %2113 = vmatpush1.msra.mxu0 %v1506
    %2114 = vmatprep.subr.mxu0 0.0
    %2115 = vmatpush1.msra.mxu0 %v1507
    %2116 = vmatprep.subr.mxu0 0.0
    %2117 = vmatpush1.msra.mxu0 %v1508
    %2118 = vmatprep.subr.mxu0 0.0
    %2119 = vmatpush1.msra.mxu0 %v1509
    %2120 = vmatprep.subr.mxu0 0.0
    %2121 = vmatpush1.msra.mxu0 %v1510
    %2122 = vmatprep.mubr.f32.mxu0 %v1620
    %2123 = vmatmul.mubr.f32.gmra.mrb[0].mxu0 %v1612
    %v2124 = vpop.f32.mrb[0].mxu0
    %v2125 = vadd.f32 %v2055, %v2124
    %v2126 = vpop.f32.mrb[0].mxu0
    %2127 = vdwg.mxu0
    %2128 = vmatprep.subr.mxu0 0.0
    %2129 = vmatpush1.msra.mxu0 %v1511
    %2130 = vmatprep.subr.mxu0 0.0
    %2131 = vmatpush1.msra.mxu0 %v1512
    %2132 = vmatprep.subr.mxu0 0.0
    %2133 = vmatpush1.msra.mxu0 %v1513
    %2134 = vmatprep.subr.mxu0 0.0
    %2135 = vmatpush1.msra.mxu0 %v1514
    %2136 = vmatprep.subr.mxu0 0.0
    %2137 = vmatpush1.msra.mxu0 %v1515
    %2138 = vmatprep.subr.mxu0 0.0
    %2139 = vmatpush1.msra.mxu0 %v1516
    %2140 = vmatprep.subr.mxu0 0.0
    %2141 = vmatpush1.msra.mxu0 %v1517
    %2142 = vmatprep.subr.mxu0 0.0
    %2143 = vmatpush1.msra.mxu0 %v1518
    %2144 = vmatprep.subr.mxu0 0.0
    %2145 = vmatpush1.msra.mxu0 %v1519
    %2146 = vmatprep.subr.mxu0 0.0
    %2147 = vmatpush1.msra.mxu0 %v1520
    %2148 = vmatprep.subr.mxu0 0.0
    %2149 = vmatpush1.msra.mxu0 %v1521
    %2150 = vmatprep.subr.mxu0 0.0
    %2151 = vmatpush1.msra.mxu0 %v1522
    %2152 = vmatprep.subr.mxu0 0.0
    %2153 = vmatpush1.msra.mxu0 %v1523
    %2154 = vmatprep.subr.mxu0 0.0
    %2155 = vmatpush1.msra.mxu0 %v1524
    %2156 = vmatprep.subr.mxu0 0.0
    %2157 = vmatpush1.msra.mxu0 %v1525
    %2158 = vmatprep.subr.mxu0 0.0
    %2159 = vmatpush1.msra.mxu0 %v1526
    %2160 = vmatprep.subr.mxu0 0.0
    %2161 = vmatpush1.msra.mxu0 %v1527
    %2162 = vmatprep.subr.mxu0 0.0
    %2163 = vmatpush1.msra.mxu0 %v1528
    %2164 = vmatprep.subr.mxu0 0.0
    %2165 = vmatpush1.msra.mxu0 %v1529
    %2166 = vmatprep.subr.mxu0 0.0
    %2167 = vmatpush1.msra.mxu0 %v1530
    %2168 = vmatprep.subr.mxu0 0.0
    %2169 = vmatpush1.msra.mxu0 %v1531
    %2170 = vmatprep.subr.mxu0 0.0
    %2171 = vmatpush1.msra.mxu0 %v1532
    %2172 = vmatprep.subr.mxu0 0.0
    %2173 = vmatpush1.msra.mxu0 %v1533
    %2174 = vmatprep.subr.mxu0 0.0
    %2175 = vmatpush1.msra.mxu0 %v1534
    %2176 = vmatprep.subr.mxu0 0.0
    %2177 = vmatpush1.msra.mxu0 %v1535
    %2178 = vmatprep.subr.mxu0 0.0
    %2179 = vmatpush1.msra.mxu0 %v1536
    %2180 = vmatprep.subr.mxu0 0.0
    %2181 = vmatpush1.msra.mxu0 %v1537
    %2182 = vmatprep.subr.mxu0 0.0
    %2183 = vmatpush1.msra.mxu0 %v1538
    %2184 = vmatprep.subr.mxu0 0.0
    %2185 = vmatpush1.msra.mxu0 %v1539
    %2186 = vmatprep.subr.mxu0 0.0
    %2187 = vmatpush1.msra.mxu0 %v1540
    %2188 = vmatprep.subr.mxu0 0.0
    %2189 = vmatpush1.msra.mxu0 %v1541
    %2190 = vmatprep.subr.mxu0 0.0
    %2191 = vmatpush1.msra.mxu0 %v1542
    %2192 = vmatprep.mubr.f32.mxu0 %v1621
    %2193 = vmatmul.mubr.f32.gmra.mrb[0].mxu0 %v1619
    %v2194 = vpop.f32.mrb[0].mxu0
    %v2195 = vadd.f32 %v2125, %v2194
    %v2196 = vpop.f32.mrb[0].mxu0
    %2197 = vdwg.mxu0
    %v2198 = vmax.f32 %v2195, 0.0
    %v2199 = vld [vmem:[%s8] sm:$0xff]
    %v2200 = vld [vmem:[%s8 + $0x8] sm:$0xff]
    %v2201 = vld [vmem:[%s8 + $0x10] sm:$0xff]
    %v2202 = vld [vmem:[%s8 + $0x18] sm:$0xff]
    %v2203 = vld [vmem:[%s9] sm:$0x1]
    %v2205 = vlaneseq
    %v2206 = vshrl.u32 %v2205, 7
    %v2207 = vsub.s32 0, %v2206
    %v2208 = vrot.slane %v2203, %v2207
    %vm2210 = vcmask 261120
    %v2212 = vsel %vm2210, %v2198, 0
    %2214 = vmatprep.subr.mxu0 0.0
    %2215 = vmatpush1.msra.mxu0 %v2199
    %2216 = vmatprep.subr.mxu0 0.0
    %2217 = vmatpush1.msra.mxu0 %v2200
    %2218 = vmatprep.subr.mxu0 0.0
    %2219 = vmatpush1.msra.mxu0 %v2201
    %2220 = vmatprep.subr.mxu0 0.0
    %2221 = vmatpush1.msra.mxu0 %v2202
    %2222 = vmatprep.subr.mxu0 0.0
    %2223 = vmatpush1.msra.mxu0 0.0
    %2224 = vmatprep.subr.mxu0 0.0
    %2225 = vmatpush1.msra.mxu0 0.0
    %2226 = vmatprep.subr.mxu0 0.0
    %2227 = vmatpush1.msra.mxu0 0.0
    %2228 = vmatprep.subr.mxu0 0.0
    %2229 = vmatpush1.msra.mxu0 0.0
    %2230 = vmatprep.subr.mxu0 0.0
    %2231 = vmatpush1.msra.mxu0 0.0
    %2232 = vmatprep.subr.mxu0 0.0
    %2233 = vmatpush1.msra.mxu0 0.0
    %2234 = vmatprep.subr.mxu0 0.0
    %2235 = vmatpush1.msra.mxu0 0.0
    %2236 = vmatprep.subr.mxu0 0.0
    %2237 = vmatpush1.msra.mxu0 0.0
    %2238 = vmatprep.subr.mxu0 0.0
    %2239 = vmatpush1.msra.mxu0 0.0
    %2240 = vmatprep.subr.mxu0 0.0
    %2241 = vmatpush1.msra.mxu0 0.0
    %2242 = vmatprep.subr.mxu0 0.0
    %2243 = vmatpush1.msra.mxu0 0.0
    %2244 = vmatprep.subr.mxu0 0.0
    %2245 = vmatpush1.msra.mxu0 0.0
    %2246 = vmatprep.subr.mxu0 0.0
    %2247 = vmatpush1.msra.mxu0 0.0
    %2248 = vmatprep.subr.mxu0 0.0
    %2249 = vmatpush1.msra.mxu0 0.0
    %2250 = vmatprep.subr.mxu0 0.0
    %2251 = vmatpush1.msra.mxu0 0.0
    %2252 = vmatprep.subr.mxu0 0.0
    %2253 = vmatpush1.msra.mxu0 0.0
    %2254 = vmatprep.subr.mxu0 0.0
    %2255 = vmatpush1.msra.mxu0 0.0
    %2256 = vmatprep.subr.mxu0 0.0
    %2257 = vmatpush1.msra.mxu0 0.0
    %2258 = vmatprep.subr.mxu0 0.0
    %2259 = vmatpush1.msra.mxu0 0.0
    %2260 = vmatprep.subr.mxu0 0.0
    %2261 = vmatpush1.msra.mxu0 0.0
    %2262 = vmatprep.subr.mxu0 0.0
    %2263 = vmatpush1.msra.mxu0 0.0
    %2264 = vmatprep.subr.mxu0 0.0
    %2265 = vmatpush1.msra.mxu0 0.0
    %2266 = vmatprep.subr.mxu0 0.0
    %2267 = vmatpush1.msra.mxu0 0.0
    %2268 = vmatprep.subr.mxu0 0.0
    %2269 = vmatpush1.msra.mxu0 0.0
    %2270 = vmatprep.subr.mxu0 0.0
    %2271 = vmatpush1.msra.mxu0 0.0
    %2272 = vmatprep.subr.mxu0 0.0
    %2273 = vmatpush1.msra.mxu0 0.0
    %2274 = vmatprep.subr.mxu0 0.0
    %2275 = vmatpush1.msra.mxu0 0.0
    %2276 = vmatprep.subr.mxu0 0.0
    %2277 = vmatpush1.msra.mxu0 0.0
    %2278 = vmatprep.mubr.f32.mxu0 0.0
    %2279 = vmatmul.mubr.f32.gmra.mrb[0].mxu0 %v2212
    %v2280 = vpop.f32.mrb[0].mxu0
    %v2281 = vadd.f32 %v2208, %v2280
    %v2282 = vpop.f32.mrb[0].mxu0
    %2283 = vdwg.mxu0
    %v2284 = vmax.f32 %v2281, 0.0
    %v2285 = vld [vmem:[%s10] sm:$0xff]
    %v2286 = vld [vmem:[%s10 + $0x8] sm:$0xff]
    %v2287 = vld [vmem:[%s10 + $0x10] sm:$0xff]
    %v2288 = vld [vmem:[%s10 + $0x18] sm:$0xff]
    %v2289 = vld [vmem:[%s11] sm:$0x1]
    %v2291 = vlaneseq
    %v2292 = vshrl.u32 %v2291, 7
    %v2293 = vsub.s32 0, %v2292
    %v2294 = vrot.slane %v2289, %v2293
    %v2297 = vsel %vm2210, %v2284, 0
    %2299 = vmatprep.subr.mxu0 0.0
    %2300 = vmatpush1.msra.mxu0 %v2285
    %2301 = vmatprep.subr.mxu0 0.0
    %2302 = vmatpush1.msra.mxu0 %v2286
    %2303 = vmatprep.subr.mxu0 0.0
    %2304 = vmatpush1.msra.mxu0 %v2287
    %2305 = vmatprep.subr.mxu0 0.0
    %2306 = vmatpush1.msra.mxu0 %v2288
    %2307 = vmatprep.subr.mxu0 0.0
    %2308 = vmatpush1.msra.mxu0 0.0
    %2309 = vmatprep.subr.mxu0 0.0
    %2310 = vmatpush1.msra.mxu0 0.0
    %2311 = vmatprep.subr.mxu0 0.0
    %2312 = vmatpush1.msra.mxu0 0.0
    %2313 = vmatprep.subr.mxu0 0.0
    %2314 = vmatpush1.msra.mxu0 0.0
    %2315 = vmatprep.subr.mxu0 0.0
    %2316 = vmatpush1.msra.mxu0 0.0
    %2317 = vmatprep.subr.mxu0 0.0
    %2318 = vmatpush1.msra.mxu0 0.0
    %2319 = vmatprep.subr.mxu0 0.0
    %2320 = vmatpush1.msra.mxu0 0.0
    %2321 = vmatprep.subr.mxu0 0.0
    %2322 = vmatpush1.msra.mxu0 0.0
    %2323 = vmatprep.subr.mxu0 0.0
    %2324 = vmatpush1.msra.mxu0 0.0
    %2325 = vmatprep.subr.mxu0 0.0
    %2326 = vmatpush1.msra.mxu0 0.0
    %2327 = vmatprep.subr.mxu0 0.0
    %2328 = vmatpush1.msra.mxu0 0.0
    %2329 = vmatprep.subr.mxu0 0.0
    %2330 = vmatpush1.msra.mxu0 0.0
    %2331 = vmatprep.subr.mxu0 0.0
    %2332 = vmatpush1.msra.mxu0 0.0
    %2333 = vmatprep.subr.mxu0 0.0
    %2334 = vmatpush1.msra.mxu0 0.0
    %2335 = vmatprep.subr.mxu0 0.0
    %2336 = vmatpush1.msra.mxu0 0.0
    %2337 = vmatprep.subr.mxu0 0.0
    %2338 = vmatpush1.msra.mxu0 0.0
    %2339 = vmatprep.subr.mxu0 0.0
    %2340 = vmatpush1.msra.mxu0 0.0
    %2341 = vmatprep.subr.mxu0 0.0
    %2342 = vmatpush1.msra.mxu0 0.0
    %2343 = vmatprep.subr.mxu0 0.0
    %2344 = vmatpush1.msra.mxu0 0.0
    %2345 = vmatprep.subr.mxu0 0.0
    %2346 = vmatpush1.msra.mxu0 0.0
    %2347 = vmatprep.subr.mxu0 0.0
    %2348 = vmatpush1.msra.mxu0 0.0
    %2349 = vmatprep.subr.mxu0 0.0
    %2350 = vmatpush1.msra.mxu0 0.0
    %2351 = vmatprep.subr.mxu0 0.0
    %2352 = vmatpush1.msra.mxu0 0.0
    %2353 = vmatprep.subr.mxu0 0.0
    %2354 = vmatpush1.msra.mxu0 0.0
    %2355 = vmatprep.subr.mxu0 0.0
    %2356 = vmatpush1.msra.mxu0 0.0
    %2357 = vmatprep.subr.mxu0 0.0
    %2358 = vmatpush1.msra.mxu0 0.0
    %2359 = vmatprep.subr.mxu0 0.0
    %2360 = vmatpush1.msra.mxu0 0.0
    %2361 = vmatprep.subr.mxu0 0.0
    %2362 = vmatpush1.msra.mxu0 0.0
    %2363 = vmatprep.mubr.f32.mxu0 0.0
    %2364 = vmatmul.mubr.f32.gmra.mrb[0].mxu0 %v2297
    %v2365 = vpop.f32.mrb[0].mxu0
    %v2366 = vadd.f32 %v2294, %v2365
    %v2367 = vpop.f32.mrb[0].mxu0
    %2368 = vdwg.mxu0
    %2369 = vst [vmem:[#allocation4] sm:$0x3] %v2366
    // Predicated region
    $region50: #{deepened_network_forward.1} parent=1 // pred_check
      _
    $region51: #{deepened_network_forward.1} parent=1 // pred_check_branch
      %2371 = sbr.rel (0) target = $region53
    $region52: #{deepened_network_forward.1} parent=1 // pred_region
      %s2373 = ssub.s32 32, 32
      %2374 = vsyncadd [#allocation5], %s2373
      %s2376 = sshll.u32 [#allocation4], 4
      %s2377 = int_to_ptr.vmem [resolvable:$true] %s2376
      %2379 = dma.vmem_to_hbm [thread:$0]  %s2377, 32, %s12, [#allocation5]
    $region53: #{deepened_network_forward.1} parent=1 // pred_fallthru
      _
    // Predicated region
    $region54: #{deepened_network_forward.1} parent=1 // pred_check
      _
    $region55: #{deepened_network_forward.1} parent=1 // pred_check_branch
      %2381 = sbr.rel (0) target = $region57
    $region56: #{deepened_network_forward.1} parent=1 // pred_region
      %2382 = dma.done [#allocation5], 32
    $region57: #{deepened_network_forward.1} parent=1 // pred_fallthru
      _
    %2383 = vsyncpa [#allocation5], 1

</llo_original>
